<compile_context>
chip_gen: v5e
topology: v5e:2x2
jax: 0.10.0
libtpu: 0.0.40
codegen_flags: <defaults>
</compile_context>

<pallas_src>
import functools

import numpy as np
import jax
import jax.numpy as jnp
from jax import lax
from jax.experimental import pallas as pl
from jax.experimental.pallas import tpu as pltpu

# ----- model dimensions (derived from the module: flatten dim 432 = 16*3*9) -----
BATCH = 2
H_IN, W_IN = 12, 48            # input spatial; NCHW input is (B, 1, 12, 48)
C1, C2 = 6, 16                 # conv channel counts
KW = 5                         # conv kernel (1, 5)
H1, W1 = H_IN, W_IN - (KW - 1)          # 12, 44  conv1 out
HP1, WP1 = H1 // 2, W1 // 2             # 6, 22   pool1 out
H2, W2 = HP1, WP1 - (KW - 1)            # 6, 18   conv2 out
HP2, WP2 = H2 // 2, W2 // 2             # 3, 9    pool2 out
FLAT = C2 * HP2 * WP2                   # 432
FC1, FC2 = 100, 50
NUM_CLASSES = 10                        # args.num_classes
OUT_PAD = 128                           # lane-dense padded logits width


def modified_motion_kernel(
    x_ref,                     # (H_IN*B, W_IN)              rows = (h, b), cols = w
    t1_ref, b1_ref,            # (W_IN, C1*W1), (1, C1*W1)   banded conv1 weight / bias
    sh1_ref, sw1_ref,          # (HP1*B, H1*B - B), (C1*W1 - 1, C1*WP1)
    t2_ref, b2_ref,            # (C1*WP1, C2*W2), (1, C2*W2) banded conv2 weight / bias
    sh2_ref, sw2_ref,          # (HP2*B, HP1*B - B), (C2*W2 - 1, C2*WP2)
    wfc1_ref, bfc1_ref,        # (HP2, C2*WP2, FC1), (1, FC1)
    wfc2_ref, bfc2_ref,        # (FC1, FC2), (1, FC2)
    wfc3_ref, bfc3_ref,        # (FC2, OUT_PAD), (1, OUT_PAD)  zero-padded past col 10
    out_ref,                   # (B, OUT_PAD)
):
    def dot(a, b):
        return jnp.dot(a, b, preferred_element_type=jnp.float32)

    def pool_relu(y, sh, sw):
        # Batched 2x2 max-pool (stride 2): rows are (h, b) so the h-neighbour is
        # BATCH sublanes away, cols are (c, w) so the w-neighbour is 1 lane away.
        # Shifted elementwise max, then pick even (h, w) positions with
        # block-diagonal selection matmuls (never crosses batch/channel blocks).
        # Matmul order (sh @ m) @ sw is the lower-FLOP association.
        r, c = y.shape
        rmax = jnp.maximum(y[0:r - BATCH, :], y[BATCH:, :])
        m = jnp.maximum(rmax[:, 0:c - 1], rmax[:, 1:])
        return jnp.maximum(dot(dot(sh, m), sw), 0.0)

    # shared: conv(1->6,(1,5)) -> pool(2) -> relu -> conv(6->16,(1,5)) -> pool(2) -> relu
    y1 = dot(x_ref[...], t1_ref[...]) + b1_ref[...]         # (H1*B, C1*W1)   one matmul
    z1 = pool_relu(y1, sh1_ref[...], sw1_ref[...])          # (HP1*B, C1*WP1) two matmuls
    y2 = dot(z1, t2_ref[...]) + b2_ref[...]                 # (H2*B, C2*W2)   one matmul
    z2 = pool_relu(y2, sh2_ref[...], sw2_ref[...])          # (HP2*B, C2*WP2) two matmuls

    # classifier: 432 -> 100 -> 50 -> num_classes  (3 + 1 + 1 dots)
    h1 = bfc1_ref[...]                                      # (1, FC1)
    for h in range(HP2):                                    # rows h*B .. h*B+B-1 = batch
        h1 = h1 + dot(z2[h * BATCH:(h + 1) * BATCH, :], wfc1_ref[h])
    h1 = jnp.maximum(h1, 0.0)                               # (B, FC1)
    h2 = jnp.maximum(dot(h1, wfc2_ref[...]) + bfc2_ref[...], 0.0)
    out_ref[...] = dot(h2, wfc3_ref[...]) + bfc3_ref[...]   # lane-dense (B, 128) store


# ----------------------------- host-side glue -----------------------------
def _conv_band_matrix(w, in_w):
    # w: (Cout, Cin, 1, KW) -> T: (Cin*in_w, Cout*out_w) with
    # T[ci*in_w + wi, co*out_w + wo] = w[co, ci, 0, wi - wo] for 0 <= wi - wo < KW.
    c_out, c_in, _, kw = w.shape
    out_w = in_w - kw + 1
    d = jnp.arange(in_w)[:, None] - jnp.arange(out_w)[None, :]
    valid = (d >= 0) & (d < kw)
    taps = w[:, :, 0, :][:, :, jnp.clip(d, 0, kw - 1)]          # (co, ci, in_w, out_w)
    taps = jnp.where(valid[None, None], taps, 0.0)
    return jnp.transpose(taps, (1, 2, 0, 3)).reshape(c_in * in_w, c_out * out_w)


def _pool_row_select(h_out, rows_m):
    # (h_out*B, rows_m): dest (h, b) <- row 2h*B + b of the shifted-max tile.
    dest = jnp.arange(h_out * BATCH)
    src = 2 * (dest // BATCH) * BATCH + (dest % BATCH)
    return (src[:, None] == jnp.arange(rows_m)[None, :]).astype(jnp.float32)


def _pool_col_select(channels, w_in, cols_m):
    # (cols_m, channels*w_out): dest (c, w) <- col c*w_in + 2w of the shifted-max tile.
    w_out = w_in // 2
    dest = jnp.arange(channels * w_out)
    src = (dest // w_out) * w_in + 2 * (dest % w_out)
    return (jnp.arange(cols_m)[:, None] == src[None, :]).astype(jnp.float32)


@functools.partial(jax.jit, static_argnames=())
def modified_motion_forward(x_nchw, params):
    (w1, b1, w2, b2, wl1, bl1, wl2, bl2, wl3, bl3) = params   # PyTorch layouts
    assert x_nchw.shape[0] == BATCH

    # activations: rows = (h, b) on sublanes, cols = (channel, w) on lanes
    x = jnp.transpose(x_nchw[:, 0, :, :], (1, 0, 2)).reshape(H_IN * BATCH, W_IN)

    # conv-as-matmul banded weights + per-lane bias rows
    t1 = _conv_band_matrix(w1, W_IN)                  # (48, 264)
    b1_row = jnp.repeat(b1, W1)[None, :]              # (1, 264)
    t2 = _conv_band_matrix(w2, WP1)                   # (132, 288)
    b2_row = jnp.repeat(b2, W2)[None, :]              # (1, 288)

    # block-diagonal pooling selection matrices (batched over batch + channels)
    sh1 = _pool_row_select(HP1, H1 * BATCH - BATCH)   # (12, 22)
    sw1 = _pool_col_select(C1, W1, C1 * W1 - 1)       # (263, 132)
    sh2 = _pool_row_select(HP2, HP1 * BATCH - BATCH)  # (6, 10)
    sw2 = _pool_col_select(C2, W2, C2 * W2 - 1)       # (287, 144)

    # classifier weights: fold the NCHW (c, h, w) flatten order into FC1's layout,
    # zero-pad FC3 to 128 lanes so the kernel's only store is lane-dense.
    wfc1 = jnp.transpose(wl1.reshape(FC1, C2, HP2, WP2), (2, 1, 3, 0)) \
              .reshape(HP2, C2 * WP2, FC1)            # (3, 144, 100)
    bfc1 = bl1[None, :]
    wfc2 = wl2.T
    bfc2 = bl2[None, :]
    wfc3 = jnp.zeros((FC2, OUT_PAD), jnp.float32).at[:, :NUM_CLASSES].set(wl3.T)
    bfc3 = jnp.zeros((1, OUT_PAD), jnp.float32).at[:, :NUM_CLASSES].set(bl3)

    vmem = pl.BlockSpec(memory_space=pltpu.MemorySpace.VMEM)
    out = pl.pallas_call(
        modified_motion_kernel,
        out_shape=jax.ShapeDtypeStruct((BATCH, OUT_PAD), jnp.float32),
        in_specs=[vmem] * 15,
        out_specs=vmem,
    )(x, t1, b1_row, sh1, sw1, t2, b2_row, sh2, sw2,
      wfc1, bfc1, wfc2, bfc2, wfc3, bfc3)

    return out[:, :NUM_CLASSES]                        # (B, NUM_CLASSES)


# ----------------------------- pure-JAX reference -----------------------------
def reference_forward(x_nchw, params):
    (w1, b1, w2, b2, wl1, bl1, wl2, bl2, wl3, bl3) = params

    def conv(x, w):
        dn = lax.conv_dimension_numbers(x.shape, w.shape, ('NCHW', 'OIHW', 'NCHW'))
        return lax.conv_general_dilated(x, w, (1, 1), 'VALID', dimension_numbers=dn,
                                        precision=lax.Precision.HIGHEST)

    def pool(y):
        b, c, h, w = y.shape
        return y.reshape(b, c, h // 2, 2, w // 2, 2).max(axis=(3, 5))

    y = conv(x_nchw, w1) + b1[None, :, None, None]
    y = jnp.maximum(pool(y), 0.0)
    y = conv(y, w2) + b2[None, :, None, None]
    y = jnp.maximum(pool(y), 0.0)
    f = y.reshape(y.shape[0], -1)
    h = jnp.maximum(f @ wl1.T + bl1, 0.0)
    h = jnp.maximum(h @ wl2.T + bl2, 0.0)
    return h @ wl3.T + bl3


if __name__ == "__main__":
    key = jax.random.PRNGKey(0)
    ks = jax.random.split(key, 11)
    s = 0.1
    params = (
        jax.random.normal(ks[0], (C1, 1, 1, KW), jnp.float32) * s,        # conv1 weight
        jax.random.normal(ks[1], (C1,), jnp.float32) * s,                 # conv1 bias
        jax.random.normal(ks[2], (C2, C1, 1, KW), jnp.float32) * s,       # conv2 weight
        jax.random.normal(ks[3], (C2,), jnp.float32) * s,                 # conv2 bias
        jax.random.normal(ks[4], (FC1, FLAT), jnp.float32) * s,           # fc1 weight
        jax.random.normal(ks[5], (FC1,), jnp.float32) * s,                # fc1 bias
        jax.random.normal(ks[6], (FC2, FC1), jnp.float32) * s,            # fc2 weight
        jax.random.normal(ks[7], (FC2,), jnp.float32) * s,                # fc2 bias
        jax.random.normal(ks[8], (NUM_CLASSES, FC2), jnp.float32) * s,    # fc3 weight
        jax.random.normal(ks[9], (NUM_CLASSES,), jnp.float32) * s,        # fc3 bias
    )
    x = jax.random.normal(ks[10], (BATCH, 1, H_IN, W_IN), jnp.float32)

    out = modified_motion_forward(x, params)
    out = jax.block_until_ready(out)

    ref = reference_forward(x, params)
    np.testing.assert_allclose(np.asarray(out), np.asarray(ref), rtol=2e-3, atol=2e-3)
    print("KERNEL_OK")
</pallas_src>

<mosaic_0001>
module attributes {stable_mosaic.version = 11 : i64} {
  func.func @modified_motion_kernel(%arg0: memref<24x48xf32, #tpu.memory_space<vmem>>, %arg1: memref<48x264xf32, #tpu.memory_space<vmem>>, %arg2: memref<1x264xf32, #tpu.memory_space<vmem>>, %arg3: memref<12x22xf32, #tpu.memory_space<vmem>>, %arg4: memref<263x132xf32, #tpu.memory_space<vmem>>, %arg5: memref<132x288xf32, #tpu.memory_space<vmem>>, %arg6: memref<1x288xf32, #tpu.memory_space<vmem>>, %arg7: memref<6x10xf32, #tpu.memory_space<vmem>>, %arg8: memref<287x144xf32, #tpu.memory_space<vmem>>, %arg9: memref<3x144x100xf32, #tpu.memory_space<vmem>>, %arg10: memref<1x100xf32, #tpu.memory_space<vmem>>, %arg11: memref<100x50xf32, #tpu.memory_space<vmem>>, %arg12: memref<1x50xf32, #tpu.memory_space<vmem>>, %arg13: memref<50x128xf32, #tpu.memory_space<vmem>>, %arg14: memref<1x128xf32, #tpu.memory_space<vmem>>, %arg15: memref<2x128xf32, #tpu.memory_space<vmem>>) attributes {dimension_semantics = [], scalar_prefetch = 0 : i64, scratch_operands = 0 : i64, tpu.core_type = #tpu.core_type<tc>} {
    %c0 = arith.constant 0 : index
    %c0_0 = arith.constant 0 : index
    %0 = vector.load %arg0[%c0, %c0_0] : memref<24x48xf32, #tpu.memory_space<vmem>>, vector<24x48xf32>
    %c0_1 = arith.constant 0 : index
    %c0_2 = arith.constant 0 : index
    %1 = vector.load %arg1[%c0_1, %c0_2] : memref<48x264xf32, #tpu.memory_space<vmem>>, vector<48x264xf32>
    %cst = arith.constant dense<0.000000e+00> : vector<24x264xf32>
    %2 = tpu.matmul %0, %1, %cst {dimension_numbers = #tpu.dot_dimension_numbers<[1], [0], [0], [1], [0, 0, 1, 1], [], []>} : vector<24x48xf32>, vector<48x264xf32>, vector<24x264xf32> -> vector<24x264xf32>
    %c0_3 = arith.constant 0 : index
    %c0_4 = arith.constant 0 : index
    %3 = vector.load %arg2[%c0_3, %c0_4] : memref<1x264xf32, #tpu.memory_space<vmem>>, vector<1x264xf32>
    %4 = vector.broadcast %3 : vector<1x264xf32> to vector<24x264xf32>
    %5 = arith.addf %2, %4 : vector<24x264xf32>
    %c0_5 = arith.constant 0 : index
    %c0_6 = arith.constant 0 : index
    %6 = vector.load %arg3[%c0_5, %c0_6] : memref<12x22xf32, #tpu.memory_space<vmem>>, vector<12x22xf32>
    %c0_7 = arith.constant 0 : index
    %c0_8 = arith.constant 0 : index
    %7 = vector.load %arg4[%c0_7, %c0_8] : memref<263x132xf32, #tpu.memory_space<vmem>>, vector<263x132xf32>
    %8 = vector.extract_strided_slice %5 {offsets = [0, 0], sizes = [22, 264], strides = [1, 1]} : vector<24x264xf32> to vector<22x264xf32>
    %9 = vector.extract_strided_slice %5 {offsets = [2, 0], sizes = [22, 264], strides = [1, 1]} : vector<24x264xf32> to vector<22x264xf32>
    %10 = arith.maximumf %8, %9 : vector<22x264xf32>
    %11 = vector.extract_strided_slice %10 {offsets = [0, 0], sizes = [22, 263], strides = [1, 1]} : vector<22x264xf32> to vector<22x263xf32>
    %12 = vector.extract_strided_slice %10 {offsets = [0, 1], sizes = [22, 263], strides = [1, 1]} : vector<22x264xf32> to vector<22x263xf32>
    %13 = arith.maximumf %11, %12 : vector<22x263xf32>
    %cst_9 = arith.constant dense<0.000000e+00> : vector<12x263xf32>
    %14 = tpu.matmul %6, %13, %cst_9 {dimension_numbers = #tpu.dot_dimension_numbers<[1], [0], [0], [1], [0, 0, 1, 1], [], []>} : vector<12x22xf32>, vector<22x263xf32>, vector<12x263xf32> -> vector<12x263xf32>
    %cst_10 = arith.constant dense<0.000000e+00> : vector<12x132xf32>
    %15 = tpu.matmul %14, %7, %cst_10 {dimension_numbers = #tpu.dot_dimension_numbers<[1], [0], [0], [1], [0, 0, 1, 1], [], []>} : vector<12x263xf32>, vector<263x132xf32>, vector<12x132xf32> -> vector<12x132xf32>
    %cst_11 = arith.constant 0.000000e+00 : f32
    %16 = vector.broadcast %cst_11 : f32 to vector<12x132xf32>
    %17 = arith.maximumf %15, %16 : vector<12x132xf32>
    %c0_12 = arith.constant 0 : index
    %c0_13 = arith.constant 0 : index
    %18 = vector.load %arg5[%c0_12, %c0_13] : memref<132x288xf32, #tpu.memory_space<vmem>>, vector<132x288xf32>
    %cst_14 = arith.constant dense<0.000000e+00> : vector<12x288xf32>
    %19 = tpu.matmul %17, %18, %cst_14 {dimension_numbers = #tpu.dot_dimension_numbers<[1], [0], [0], [1], [0, 0, 1, 1], [], []>} : vector<12x132xf32>, vector<132x288xf32>, vector<12x288xf32> -> vector<12x288xf32>
    %c0_15 = arith.constant 0 : index
    %c0_16 = arith.constant 0 : index
    %20 = vector.load %arg6[%c0_15, %c0_16] : memref<1x288xf32, #tpu.memory_space<vmem>>, vector<1x288xf32>
    %21 = vector.broadcast %20 : vector<1x288xf32> to vector<12x288xf32>
    %22 = arith.addf %19, %21 : vector<12x288xf32>
    %c0_17 = arith.constant 0 : index
    %c0_18 = arith.constant 0 : index
    %23 = vector.load %arg7[%c0_17, %c0_18] : memref<6x10xf32, #tpu.memory_space<vmem>>, vector<6x10xf32>
    %c0_19 = arith.constant 0 : index
    %c0_20 = arith.constant 0 : index
    %24 = vector.load %arg8[%c0_19, %c0_20] : memref<287x144xf32, #tpu.memory_space<vmem>>, vector<287x144xf32>
    %25 = vector.extract_strided_slice %22 {offsets = [0, 0], sizes = [10, 288], strides = [1, 1]} : vector<12x288xf32> to vector<10x288xf32>
    %26 = vector.extract_strided_slice %22 {offsets = [2, 0], sizes = [10, 288], strides = [1, 1]} : vector<12x288xf32> to vector<10x288xf32>
    %27 = arith.maximumf %25, %26 : vector<10x288xf32>
    %28 = vector.extract_strided_slice %27 {offsets = [0, 0], sizes = [10, 287], strides = [1, 1]} : vector<10x288xf32> to vector<10x287xf32>
    %29 = vector.extract_strided_slice %27 {offsets = [0, 1], sizes = [10, 287], strides = [1, 1]} : vector<10x288xf32> to vector<10x287xf32>
    %30 = arith.maximumf %28, %29 : vector<10x287xf32>
    %cst_21 = arith.constant dense<0.000000e+00> : vector<6x287xf32>
    %31 = tpu.matmul %23, %30, %cst_21 {dimension_numbers = #tpu.dot_dimension_numbers<[1], [0], [0], [1], [0, 0, 1, 1], [], []>} : vector<6x10xf32>, vector<10x287xf32>, vector<6x287xf32> -> vector<6x287xf32>
    %cst_22 = arith.constant dense<0.000000e+00> : vector<6x144xf32>
    %32 = tpu.matmul %31, %24, %cst_22 {dimension_numbers = #tpu.dot_dimension_numbers<[1], [0], [0], [1], [0, 0, 1, 1], [], []>} : vector<6x287xf32>, vector<287x144xf32>, vector<6x144xf32> -> vector<6x144xf32>
    %cst_23 = arith.constant 0.000000e+00 : f32
    %33 = vector.broadcast %cst_23 : f32 to vector<6x144xf32>
    %34 = arith.maximumf %32, %33 : vector<6x144xf32>
    %c0_24 = arith.constant 0 : index
    %c0_25 = arith.constant 0 : index
    %35 = vector.load %arg10[%c0_24, %c0_25] : memref<1x100xf32, #tpu.memory_space<vmem>>, vector<1x100xf32>
    %36 = vector.extract_strided_slice %34 {offsets = [0, 0], sizes = [2, 144], strides = [1, 1]} : vector<6x144xf32> to vector<2x144xf32>
    %c0_26 = arith.constant 0 : index
    %c0_27 = arith.constant 0 : index
    %c0_28 = arith.constant 0 : index
    %37 = vector.load %arg9[%c0_26, %c0_27, %c0_28] : memref<3x144x100xf32, #tpu.memory_space<vmem>>, vector<1x144x100xf32>
    %38 = vector.shape_cast %37 : vector<1x144x100xf32> to vector<144x100xf32>
    %cst_29 = arith.constant dense<0.000000e+00> : vector<2x100xf32>
    %39 = tpu.matmul %36, %38, %cst_29 {dimension_numbers = #tpu.dot_dimension_numbers<[1], [0], [0], [1], [0, 0, 1, 1], [], []>} : vector<2x144xf32>, vector<144x100xf32>, vector<2x100xf32> -> vector<2x100xf32>
    %40 = vector.broadcast %35 : vector<1x100xf32> to vector<2x100xf32>
    %41 = arith.addf %40, %39 : vector<2x100xf32>
    %42 = vector.extract_strided_slice %34 {offsets = [2, 0], sizes = [2, 144], strides = [1, 1]} : vector<6x144xf32> to vector<2x144xf32>
    %c1 = arith.constant 1 : index
    %c0_30 = arith.constant 0 : index
    %c0_31 = arith.constant 0 : index
    %43 = vector.load %arg9[%c1, %c0_30, %c0_31] : memref<3x144x100xf32, #tpu.memory_space<vmem>>, vector<1x144x100xf32>
    %44 = vector.shape_cast %43 : vector<1x144x100xf32> to vector<144x100xf32>
    %cst_32 = arith.constant dense<0.000000e+00> : vector<2x100xf32>
    %45 = tpu.matmul %42, %44, %cst_32 {dimension_numbers = #tpu.dot_dimension_numbers<[1], [0], [0], [1], [0, 0, 1, 1], [], []>} : vector<2x144xf32>, vector<144x100xf32>, vector<2x100xf32> -> vector<2x100xf32>
    %46 = arith.addf %41, %45 : vector<2x100xf32>
    %47 = vector.extract_strided_slice %34 {offsets = [4, 0], sizes = [2, 144], strides = [1, 1]} : vector<6x144xf32> to vector<2x144xf32>
    %c2 = arith.constant 2 : index
    %c0_33 = arith.constant 0 : index
    %c0_34 = arith.constant 0 : index
    %48 = vector.load %arg9[%c2, %c0_33, %c0_34] : memref<3x144x100xf32, #tpu.memory_space<vmem>>, vector<1x144x100xf32>
    %49 = vector.shape_cast %48 : vector<1x144x100xf32> to vector<144x100xf32>
    %cst_35 = arith.constant dense<0.000000e+00> : vector<2x100xf32>
    %50 = tpu.matmul %47, %49, %cst_35 {dimension_numbers = #tpu.dot_dimension_numbers<[1], [0], [0], [1], [0, 0, 1, 1], [], []>} : vector<2x144xf32>, vector<144x100xf32>, vector<2x100xf32> -> vector<2x100xf32>
    %51 = arith.addf %46, %50 : vector<2x100xf32>
    %cst_36 = arith.constant 0.000000e+00 : f32
    %52 = vector.broadcast %cst_36 : f32 to vector<2x100xf32>
    %53 = arith.maximumf %51, %52 : vector<2x100xf32>
    %c0_37 = arith.constant 0 : index
    %c0_38 = arith.constant 0 : index
    %54 = vector.load %arg11[%c0_37, %c0_38] : memref<100x50xf32, #tpu.memory_space<vmem>>, vector<100x50xf32>
    %cst_39 = arith.constant dense<0.000000e+00> : vector<2x50xf32>
    %55 = tpu.matmul %53, %54, %cst_39 {dimension_numbers = #tpu.dot_dimension_numbers<[1], [0], [0], [1], [0, 0, 1, 1], [], []>} : vector<2x100xf32>, vector<100x50xf32>, vector<2x50xf32> -> vector<2x50xf32>
    %c0_40 = arith.constant 0 : index
    %c0_41 = arith.constant 0 : index
    %56 = vector.load %arg12[%c0_40, %c0_41] : memref<1x50xf32, #tpu.memory_space<vmem>>, vector<1x50xf32>
    %57 = vector.broadcast %56 : vector<1x50xf32> to vector<2x50xf32>
    %58 = arith.addf %55, %57 : vector<2x50xf32>
    %cst_42 = arith.constant 0.000000e+00 : f32
    %59 = vector.broadcast %cst_42 : f32 to vector<2x50xf32>
    %60 = arith.maximumf %58, %59 : vector<2x50xf32>
    %c0_43 = arith.constant 0 : index
    %c0_44 = arith.constant 0 : index
    %61 = vector.load %arg13[%c0_43, %c0_44] : memref<50x128xf32, #tpu.memory_space<vmem>>, vector<50x128xf32>
    %cst_45 = arith.constant dense<0.000000e+00> : vector<2x128xf32>
    %62 = tpu.matmul %60, %61, %cst_45 {dimension_numbers = #tpu.dot_dimension_numbers<[1], [0], [0], [1], [0, 0, 1, 1], [], []>} : vector<2x50xf32>, vector<50x128xf32>, vector<2x128xf32> -> vector<2x128xf32>
    %c0_46 = arith.constant 0 : index
    %c0_47 = arith.constant 0 : index
    %63 = vector.load %arg14[%c0_46, %c0_47] : memref<1x128xf32, #tpu.memory_space<vmem>>, vector<1x128xf32>
    %64 = vector.broadcast %63 : vector<1x128xf32> to vector<2x128xf32>
    %65 = arith.addf %62, %64 : vector<2x128xf32>
    %c0_48 = arith.constant 0 : index
    %c0_49 = arith.constant 0 : index
    %66 = vector.load %arg15[%c0_48, %c0_49] : memref<2x128xf32, #tpu.memory_space<vmem>>, vector<2x128xf32>
    tpu.vector_store %arg15[%c0_48, %c0_49], %65 {strides = array<i32>} : memref<2x128xf32, #tpu.memory_space<vmem>>, vector<2x128xf32>,
    return
  }
}

</mosaic_0001>

<llo_original>
// kernel: modified_motion_forward.1
$region0: #{modified_motion_forward.1}
  #allocation0 [shape = 'u32[]', space=smem, size = 0x4, offset = 0x4, fixed_abs, tag = 'smem constant byte address 0x4 - core index']
  #allocation1 [shape = 'u32[72,128]{1,0:T(1,128)}', space=vmem, size = 0x9000, scoped, tag = 'internal scratch']
  %s0 = inlined_call_operand.vmem [shape: f32[24,48], index: 0, kind: input, shape index: {}]
  %s1 = inlined_call_operand.vmem [shape: f32[48,264], index: 1, kind: input, shape index: {}]
  %s2 = inlined_call_operand.vmem [shape: f32[1,264], index: 2, kind: input, shape index: {}]
  %s3 = inlined_call_operand.vmem [shape: f32[12,22], index: 3, kind: input, shape index: {}]
  %s4 = inlined_call_operand.vmem [shape: f32[263,132], index: 4, kind: input, shape index: {}]
  %s5 = inlined_call_operand.vmem [shape: f32[132,288], index: 5, kind: input, shape index: {}]
  %s6 = inlined_call_operand.vmem [shape: f32[1,288], index: 6, kind: input, shape index: {}]
  %s7 = inlined_call_operand.vmem [shape: f32[6,10], index: 7, kind: input, shape index: {}]
  %s8 = inlined_call_operand.vmem [shape: f32[287,144], index: 8, kind: input, shape index: {}]
  %s9 = inlined_call_operand.vmem [shape: f32[3,144,100], index: 9, kind: input, shape index: {}]
  %s10 = inlined_call_operand.vmem [shape: f32[1,100], index: 10, kind: input, shape index: {}]
  %s11 = inlined_call_operand.vmem [shape: f32[100,50], index: 11, kind: input, shape index: {}]
  %s12 = inlined_call_operand.vmem [shape: f32[1,50], index: 12, kind: input, shape index: {}]
  %s13 = inlined_call_operand.vmem [shape: f32[50,128], index: 13, kind: input, shape index: {}]
  %s14 = inlined_call_operand.vmem [shape: f32[1,128], index: 14, kind: input, shape index: {}]
  %s15 = inlined_call_operand.hbm [shape: f32[2,128], index: 15, kind: output, shape index: {}]
  %s16 = sld [smem:[#allocation0]]
  $region70: #{modified_motion_forward.1} parent=0
    _
  %s18 = ssub.s32 1, %s16
  %s19 = scalar_select 0, %s18, %s16
  $region1: #{modified_motion_forward.1} parent=0
    #allocation2 [shape = 'u8[1024]{0}', space=vmem, size = 0x400, scoped, tag = 'output window, operand 0, single buffered']
    #allocation3 [shape = 's32[1]{0}', space=sflag, size = 0x4, scoped, tag = 'scoped memory for modified_motion_forward.1']
    %20 = vsyncpa [#allocation3], 0
    // Predicated region
    $region2: #{modified_motion_forward.1} parent=1 // pred_check
      _
    $region3: #{modified_motion_forward.1} parent=1 // pred_check_branch
      %22 = sbr.rel (0) target = $region5
    $region4: #{modified_motion_forward.1} parent=1 // pred_region
      _
    $region5: #{modified_motion_forward.1} parent=1 // pred_fallthru
      _
    // Predicated region
    $region6: #{modified_motion_forward.1} parent=1 // pred_check
      _
    $region7: #{modified_motion_forward.1} parent=1 // pred_check_branch
      %24 = sbr.rel (0) target = $region9
    $region8: #{modified_motion_forward.1} parent=1 // pred_region
      _
    $region9: #{modified_motion_forward.1} parent=1 // pred_fallthru
      _
    // Predicated region
    $region10: #{modified_motion_forward.1} parent=1 // pred_check
      _
    $region11: #{modified_motion_forward.1} parent=1 // pred_check_branch
      %26 = sbr.rel (0) target = $region13
    $region12: #{modified_motion_forward.1} parent=1 // pred_region
      _
    $region13: #{modified_motion_forward.1} parent=1 // pred_fallthru
      _
    // Predicated region
    $region14: #{modified_motion_forward.1} parent=1 // pred_check
      _
    $region15: #{modified_motion_forward.1} parent=1 // pred_check_branch
      %28 = sbr.rel (0) target = $region17
    $region16: #{modified_motion_forward.1} parent=1 // pred_region
      _
    $region17: #{modified_motion_forward.1} parent=1 // pred_fallthru
      _
    // Predicated region
    $region18: #{modified_motion_forward.1} parent=1 // pred_check
      _
    $region19: #{modified_motion_forward.1} parent=1 // pred_check_branch
      %30 = sbr.rel (0) target = $region21
    $region20: #{modified_motion_forward.1} parent=1 // pred_region
      _
    $region21: #{modified_motion_forward.1} parent=1 // pred_fallthru
      _
    // Predicated region
    $region22: #{modified_motion_forward.1} parent=1 // pred_check
      _
    $region23: #{modified_motion_forward.1} parent=1 // pred_check_branch
      %32 = sbr.rel (0) target = $region25
    $region24: #{modified_motion_forward.1} parent=1 // pred_region
      _
    $region25: #{modified_motion_forward.1} parent=1 // pred_fallthru
      _
    // Predicated region
    $region26: #{modified_motion_forward.1} parent=1 // pred_check
      _
    $region27: #{modified_motion_forward.1} parent=1 // pred_check_branch
      %34 = sbr.rel (0) target = $region29
    $region28: #{modified_motion_forward.1} parent=1 // pred_region
      _
    $region29: #{modified_motion_forward.1} parent=1 // pred_fallthru
      _
    // Predicated region
    $region30: #{modified_motion_forward.1} parent=1 // pred_check
      _
    $region31: #{modified_motion_forward.1} parent=1 // pred_check_branch
      %36 = sbr.rel (0) target = $region33
    $region32: #{modified_motion_forward.1} parent=1 // pred_region
      _
    $region33: #{modified_motion_forward.1} parent=1 // pred_fallthru
      _
    // Predicated region
    $region34: #{modified_motion_forward.1} parent=1 // pred_check
      _
    $region35: #{modified_motion_forward.1} parent=1 // pred_check_branch
      %38 = sbr.rel (0) target = $region37
    $region36: #{modified_motion_forward.1} parent=1 // pred_region
      _
    $region37: #{modified_motion_forward.1} parent=1 // pred_fallthru
      _
    // Predicated region
    $region38: #{modified_motion_forward.1} parent=1 // pred_check
      _
    $region39: #{modified_motion_forward.1} parent=1 // pred_check_branch
      %40 = sbr.rel (0) target = $region41
    $region40: #{modified_motion_forward.1} parent=1 // pred_region
      _
    $region41: #{modified_motion_forward.1} parent=1 // pred_fallthru
      _
    // Predicated region
    $region42: #{modified_motion_forward.1} parent=1 // pred_check
      _
    $region43: #{modified_motion_forward.1} parent=1 // pred_check_branch
      %42 = sbr.rel (0) target = $region45
    $region44: #{modified_motion_forward.1} parent=1 // pred_region
      _
    $region45: #{modified_motion_forward.1} parent=1 // pred_fallthru
      _
    // Predicated region
    $region46: #{modified_motion_forward.1} parent=1 // pred_check
      _
    $region47: #{modified_motion_forward.1} parent=1 // pred_check_branch
      %44 = sbr.rel (0) target = $region49
    $region48: #{modified_motion_forward.1} parent=1 // pred_region
      _
    $region49: #{modified_motion_forward.1} parent=1 // pred_fallthru
      _
    // Predicated region
    $region50: #{modified_motion_forward.1} parent=1 // pred_check
      _
    $region51: #{modified_motion_forward.1} parent=1 // pred_check_branch
      %46 = sbr.rel (0) target = $region53
    $region52: #{modified_motion_forward.1} parent=1 // pred_region
      _
    $region53: #{modified_motion_forward.1} parent=1 // pred_fallthru
      _
    // Predicated region
    $region54: #{modified_motion_forward.1} parent=1 // pred_check
      _
    $region55: #{modified_motion_forward.1} parent=1 // pred_check_branch
      %48 = sbr.rel (0) target = $region57
    $region56: #{modified_motion_forward.1} parent=1 // pred_region
      _
    $region57: #{modified_motion_forward.1} parent=1 // pred_fallthru
      _
    // Predicated region
    $region58: #{modified_motion_forward.1} parent=1 // pred_check
      _
    $region59: #{modified_motion_forward.1} parent=1 // pred_check_branch
      %50 = sbr.rel (0) target = $region61
    $region60: #{modified_motion_forward.1} parent=1 // pred_region
      _
    $region61: #{modified_motion_forward.1} parent=1 // pred_fallthru
      _
    %v51 = vld [vmem:[%s0] sm:$0xff]
    %v52 = vld [vmem:[%s0 + $0x8] sm:$0xff]
    %v53 = vld [vmem:[%s0 + $0x10] sm:$0xff]
    %v54 = vld [vmem:[%s1] sm:$0xff]
    %v55 = vld [vmem:[%s1 + $0x8] sm:$0xff]
    %v56 = vld [vmem:[%s1 + $0x10] sm:$0xff]
    %v57 = vld [vmem:[%s1 + $0x18] sm:$0xff]
    %v58 = vld [vmem:[%s1 + $0x20] sm:$0xff]
    %v59 = vld [vmem:[%s1 + $0x28] sm:$0xff]
    %v60 = vld [vmem:[%s1 + $0x30] sm:$0xff]
    %v61 = vld [vmem:[%s1 + $0x38] sm:$0xff]
    %v62 = vld [vmem:[%s1 + $0x40] sm:$0xff]
    %v63 = vld [vmem:[%s1 + $0x48] sm:$0xff]
    %v64 = vld [vmem:[%s1 + $0x50] sm:$0xff]
    %v65 = vld [vmem:[%s1 + $0x58] sm:$0xff]
    %v66 = vld [vmem:[%s1 + $0x60] sm:$0xff]
    %v67 = vld [vmem:[%s1 + $0x68] sm:$0xff]
    %v68 = vld [vmem:[%s1 + $0x70] sm:$0xff]
    %v69 = vld [vmem:[%s1 + $0x78] sm:$0xff]
    %v70 = vld [vmem:[%s1 + $0x80] sm:$0xff]
    %v71 = vld [vmem:[%s1 + $0x88] sm:$0xff]
    %v72 = vld [vmem:[%s2] sm:$0x7]
    %v74 = vperm.slane %v72, 0
    %v75 = vperm.slane %v72, 1
    %v76 = vperm.slane %v72, 2
    %vm80 = vcmask 392192
    %v82 = vsel %vm80, %v51, 0
    %v85 = vsel %vm80, %v52, 0
    %v88 = vsel %vm80, %v53, 0
    %90 = vmatpush.msra.mxu0 0.0
    %91 = vmatpush.msra.mxu0 0.0
    %92 = vmatpush.msra.mxu0 0.0
    %93 = vmatpush.msra.mxu0 0.0
    %94 = vmatpush.msra.mxu0 0.0
    %95 = vmatpush.msra.mxu0 0.0
    %96 = vmatpush.msra.mxu0 0.0
    %97 = vmatpush.msra.mxu0 0.0
    %98 = vmatpush.msra.mxu0 0.0
    %99 = vmatpush.msra.mxu0 0.0
    %100 = vmatpush.msra.mxu0 %v69
    %101 = vmatpush.msra.mxu0 %v66
    %102 = vmatpush.msra.mxu0 %v63
    %103 = vmatpush.msra.mxu0 %v60
    %104 = vmatpush.msra.mxu0 %v57
    %105 = vmatpush.msra.mxu0 %v54
    %106 = vmatmul.f32.gmra.mxu0 %v82
    %v107 = vpop.f32.mrf.mxu0
    %v108 = vadd.f32 %v74, %v107
    %109 = vmatmul.f32.gmra.mxu0 %v85
    %v110 = vpop.f32.mrf.mxu0
    %v111 = vadd.f32 %v74, %v110
    %112 = vmatmul.f32.gmra.mxu0 %v88
    %v113 = vpop.f32.mrf.mxu0
    %v114 = vadd.f32 %v74, %v113
    %115 = vdwg.mxu0
    %116 = vmatpush.msra.mxu0 0.0
    %117 = vmatpush.msra.mxu0 0.0
    %118 = vmatpush.msra.mxu0 0.0
    %119 = vmatpush.msra.mxu0 0.0
    %120 = vmatpush.msra.mxu0 0.0
    %121 = vmatpush.msra.mxu0 0.0
    %122 = vmatpush.msra.mxu0 0.0
    %123 = vmatpush.msra.mxu0 0.0
    %124 = vmatpush.msra.mxu0 0.0
    %125 = vmatpush.msra.mxu0 0.0
    %126 = vmatpush.msra.mxu0 %v70
    %127 = vmatpush.msra.mxu0 %v67
    %128 = vmatpush.msra.mxu0 %v64
    %129 = vmatpush.msra.mxu0 %v61
    %130 = vmatpush.msra.mxu0 %v58
    %131 = vmatpush.msra.mxu0 %v55
    %132 = vmatmul.f32.gmra.mxu0 %v82
    %v133 = vpop.f32.mrf.mxu0
    %v134 = vadd.f32 %v75, %v133
    %135 = vmatmul.f32.gmra.mxu0 %v85
    %v136 = vpop.f32.mrf.mxu0
    %v137 = vadd.f32 %v75, %v136
    %138 = vmatmul.f32.gmra.mxu0 %v88
    %v139 = vpop.f32.mrf.mxu0
    %v140 = vadd.f32 %v75, %v139
    %141 = vdwg.mxu0
    %142 = vmatpush.msra.mxu0 0.0
    %143 = vmatpush.msra.mxu0 0.0
    %144 = vmatpush.msra.mxu0 0.0
    %145 = vmatpush.msra.mxu0 0.0
    %146 = vmatpush.msra.mxu0 0.0
    %147 = vmatpush.msra.mxu0 0.0
    %148 = vmatpush.msra.mxu0 0.0
    %149 = vmatpush.msra.mxu0 0.0
    %150 = vmatpush.msra.mxu0 0.0
    %151 = vmatpush.msra.mxu0 0.0
    %152 = vmatpush.msra.mxu0 %v71
    %153 = vmatpush.msra.mxu0 %v68
    %154 = vmatpush.msra.mxu0 %v65
    %155 = vmatpush.msra.mxu0 %v62
    %156 = vmatpush.msra.mxu0 %v59
    %157 = vmatpush.msra.mxu0 %v56
    %158 = vmatmul.f32.gmra.mxu0 %v82
    %v159 = vpop.f32.mrf.mxu0
    %v160 = vadd.f32 %v76, %v159
    %161 = vmatmul.f32.gmra.mxu0 %v85
    %v162 = vpop.f32.mrf.mxu0
    %v163 = vadd.f32 %v76, %v162
    %164 = vmatmul.f32.gmra.mxu0 %v88
    %v165 = vpop.f32.mrf.mxu0
    %v166 = vadd.f32 %v76, %v165
    %167 = vdwg.mxu0
    %v168 = vld [vmem:[%s3] sm:$0xff]
    %v169 = vld [vmem:[%s3 + $0x8] sm:$0xf]
    %v170 = vld [vmem:[%s4] sm:$0xff]
    %v171 = vld [vmem:[%s4 + $0x8] sm:$0xff]
    %v172 = vld [vmem:[%s4 + $0x10] sm:$0xff]
    %v173 = vld [vmem:[%s4 + $0x18] sm:$0xff]
    %v174 = vld [vmem:[%s4 + $0x20] sm:$0xff]
    %v175 = vld [vmem:[%s4 + $0x28] sm:$0xff]
    %v176 = vld [vmem:[%s4 + $0x30] sm:$0xff]
    %v177 = vld [vmem:[%s4 + $0x38] sm:$0xff]
    %v178 = vld [vmem:[%s4 + $0x40] sm:$0xff]
    %v179 = vld [vmem:[%s4 + $0x48] sm:$0xff]
    %v180 = vld [vmem:[%s4 + $0x50] sm:$0xff]
    %v181 = vld [vmem:[%s4 + $0x58] sm:$0xff]
    %v182 = vld [vmem:[%s4 + $0x60] sm:$0xff]
    %v183 = vld [vmem:[%s4 + $0x68] sm:$0xff]
    %v184 = vld [vmem:[%s4 + $0x70] sm:$0xff]
    %v185 = vld [vmem:[%s4 + $0x78] sm:$0xff]
    %v186 = vld [vmem:[%s4 + $0x80] sm:$0xff]
    %v187 = vld [vmem:[%s4 + $0x88] sm:$0xff]
    %v188 = vld [vmem:[%s4 + $0x90] sm:$0xff]
    %v189 = vld [vmem:[%s4 + $0x98] sm:$0xff]
    %v190 = vld [vmem:[%s4 + $0xa0] sm:$0xff]
    %v191 = vld [vmem:[%s4 + $0xa8] sm:$0xff]
    %v192 = vld [vmem:[%s4 + $0xb0] sm:$0xff]
    %v193 = vld [vmem:[%s4 + $0xb8] sm:$0xff]
    %v194 = vld [vmem:[%s4 + $0xc0] sm:$0xff]
    %v195 = vld [vmem:[%s4 + $0xc8] sm:$0xff]
    %v196 = vld [vmem:[%s4 + $0xd0] sm:$0xff]
    %v197 = vld [vmem:[%s4 + $0xd8] sm:$0xff]
    %v198 = vld [vmem:[%s4 + $0xe0] sm:$0xff]
    %v199 = vld [vmem:[%s4 + $0xe8] sm:$0xff]
    %v200 = vld [vmem:[%s4 + $0xf0] sm:$0xff]
    %v201 = vld [vmem:[%s4 + $0xf8] sm:$0xff]
    %v202 = vld [vmem:[%s4 + $0x100] sm:$0xff]
    %v203 = vld [vmem:[%s4 + $0x108] sm:$0xff]
    %v204 = vld [vmem:[%s4 + $0x110] sm:$0xff]
    %v205 = vld [vmem:[%s4 + $0x118] sm:$0xff]
    %v206 = vld [vmem:[%s4 + $0x120] sm:$0xff]
    %v207 = vld [vmem:[%s4 + $0x128] sm:$0xff]
    %v208 = vld [vmem:[%s4 + $0x130] sm:$0xff]
    %v209 = vld [vmem:[%s4 + $0x138] sm:$0xff]
    %v210 = vld [vmem:[%s4 + $0x140] sm:$0xff]
    %v211 = vld [vmem:[%s4 + $0x148] sm:$0xff]
    %v212 = vld [vmem:[%s4 + $0x150] sm:$0xff]
    %v213 = vld [vmem:[%s4 + $0x158] sm:$0xff]
    %v214 = vld [vmem:[%s4 + $0x160] sm:$0xff]
    %v215 = vld [vmem:[%s4 + $0x168] sm:$0xff]
    %v216 = vld [vmem:[%s4 + $0x170] sm:$0xff]
    %v217 = vld [vmem:[%s4 + $0x178] sm:$0xff]
    %v218 = vld [vmem:[%s4 + $0x180] sm:$0xff]
    %v219 = vld [vmem:[%s4 + $0x188] sm:$0xff]
    %v220 = vld [vmem:[%s4 + $0x190] sm:$0xff]
    %v221 = vld [vmem:[%s4 + $0x198] sm:$0xff]
    %v222 = vld [vmem:[%s4 + $0x1a0] sm:$0xff]
    %v223 = vld [vmem:[%s4 + $0x1a8] sm:$0xff]
    %v224 = vld [vmem:[%s4 + $0x1b0] sm:$0xff]
    %v225 = vld [vmem:[%s4 + $0x1b8] sm:$0xff]
    %v226 = vld [vmem:[%s4 + $0x1c0] sm:$0xff]
    %v227 = vld [vmem:[%s4 + $0x1c8] sm:$0xff]
    %v228 = vld [vmem:[%s4 + $0x1d0] sm:$0xff]
    %v229 = vld [vmem:[%s4 + $0x1d8] sm:$0xff]
    %v230 = vld [vmem:[%s4 + $0x1e0] sm:$0xff]
    %v231 = vld [vmem:[%s4 + $0x1e8] sm:$0xff]
    %v232 = vld [vmem:[%s4 + $0x1f0] sm:$0xff]
    %v233 = vld [vmem:[%s4 + $0x1f8] sm:$0xff]
    %v234 = vld [vmem:[%s4 + $0x200] sm:$0x7f]
    %v235 = vld [vmem:[%s4 + $0x208] sm:$0x7f]
    %vm245 = vcmask 1045504
    %v246 = vrot.slane %v108, 2
    %v247 = vrot.slane %v111, 2
    %v248 = vsel %vm245, %v246, %v247
    %v249 = vrot.slane %v134, 2
    %v250 = vrot.slane %v137, 2
    %v251 = vsel %vm245, %v249, %v250
    %v252 = vrot.slane %v160, 2
    %v253 = vrot.slane %v163, 2
    %v254 = vsel %vm245, %v252, %v253
    %v255 = vrot.slane %v114, 2
    %v256 = vsel %vm245, %v247, %v255
    %v257 = vrot.slane %v140, 2
    %v258 = vsel %vm245, %v250, %v257
    %v259 = vrot.slane %v166, 2
    %v260 = vsel %vm245, %v253, %v259
    %v270 = vmax.f32 %v108, %v248
    %v271 = vmax.f32 %v134, %v251
    %v272 = vmax.f32 %v160, %v254
    %v273 = vmax.f32 %v111, %v256
    %v274 = vmax.f32 %v137, %v258
    %v275 = vmax.f32 %v163, %v260
    %v276 = vmax.f32 %v114, %v255
    %v277 = vmax.f32 %v140, %v257
    %v278 = vmax.f32 %v166, %v259
    %288 = vrot.lane.b32.xlu0 %v270, 127
    %v289 = vpop.permute.xlu0 %288
    %290 = vrot.lane.b32.xlu0 %v271, 127
    %v291 = vpop.permute.xlu0 %290
    %292 = vrot.lane.b32.xlu0 %v272, 127
    %v293 = vpop.permute.xlu0 %292
    %294 = vrot.lane.b32.xlu0 %v273, 127
    %v295 = vpop.permute.xlu0 %294
    %296 = vrot.lane.b32.xlu0 %v274, 127
    %v297 = vpop.permute.xlu0 %296
    %298 = vrot.lane.b32.xlu0 %v275, 127
    %v299 = vpop.permute.xlu0 %298
    %300 = vrot.lane.b32.xlu0 %v276, 127
    %v301 = vpop.permute.xlu0 %300
    %302 = vrot.lane.b32.xlu0 %v277, 127
    %v303 = vpop.permute.xlu0 %302
    %304 = vrot.lane.b32.xlu0 %v278, 127
    %v305 = vpop.permute.xlu0 %304
    %vm306 = vcmask 1039360
    %v307 = vsel %vm306, %v289, %v291
    %v308 = vsel %vm306, %v291, %v293
    %v309 = vsel %vm306, %v295, %v297
    %v310 = vsel %vm306, %v297, %v299
    %v311 = vsel %vm306, %v301, %v303
    %v312 = vsel %vm306, %v303, %v305
    %v322 = vmax.f32 %v270, %v307
    %v323 = vmax.f32 %v271, %v308
    %v324 = vmax.f32 %v272, %v293
    %v325 = vmax.f32 %v273, %v309
    %v326 = vmax.f32 %v274, %v310
    %v327 = vmax.f32 %v275, %v299
    %v328 = vmax.f32 %v276, %v311
    %v329 = vmax.f32 %v277, %v312
    %v330 = vmax.f32 %v278, %v305
    %vm331 = vcmask 179200
    %v333 = vsel %vm331, %v168, 0
    %v336 = vsel %vm331, %v169, 0
    %v339 = vsel %vm245, %v328, 0
    %v342 = vsel %vm245, %v329, 0
    %v345 = vsel %vm245, %v330, 0
    %347 = vmatpush.msra.mxu0 0.0
    %348 = vmatpush.msra.mxu0 0.0
    %349 = vmatpush.msra.mxu0 0.0
    %350 = vmatpush.msra.mxu0 0.0
    %351 = vmatpush.msra.mxu0 0.0
    %352 = vmatpush.msra.mxu0 0.0
    %353 = vmatpush.msra.mxu0 0.0
    %354 = vmatpush.msra.mxu0 0.0
    %355 = vmatpush.msra.mxu0 0.0
    %356 = vmatpush.msra.mxu0 0.0
    %357 = vmatpush.msra.mxu0 0.0
    %358 = vmatpush.msra.mxu0 0.0
    %359 = vmatpush.msra.mxu0 0.0
    %360 = vmatpush.msra.mxu0 %v339
    %361 = vmatpush.msra.mxu0 %v325
    %362 = vmatpush.msra.mxu0 %v322
    %363 = vmatmul.f32.gmra.mxu0 %v333
    %v364 = vpop.f32.mrf.mxu0
    %v365 = vadd.f32 0.0, %v364
    %366 = vmatmul.f32.gmra.mxu0 %v336
    %v367 = vpop.f32.mrf.mxu0
    %v368 = vadd.f32 0.0, %v367
    %369 = vdwg.mxu0
    %370 = vmatpush.msra.mxu0 0.0
    %371 = vmatpush.msra.mxu0 0.0
    %372 = vmatpush.msra.mxu0 0.0
    %373 = vmatpush.msra.mxu0 0.0
    %374 = vmatpush.msra.mxu0 0.0
    %375 = vmatpush.msra.mxu0 0.0
    %376 = vmatpush.msra.mxu0 0.0
    %377 = vmatpush.msra.mxu0 0.0
    %378 = vmatpush.msra.mxu0 0.0
    %379 = vmatpush.msra.mxu0 0.0
    %380 = vmatpush.msra.mxu0 0.0
    %381 = vmatpush.msra.mxu0 0.0
    %382 = vmatpush.msra.mxu0 0.0
    %383 = vmatpush.msra.mxu0 %v342
    %384 = vmatpush.msra.mxu0 %v326
    %385 = vmatpush.msra.mxu0 %v323
    %386 = vmatmul.f32.gmra.mxu0 %v333
    %v387 = vpop.f32.mrf.mxu0
    %v388 = vadd.f32 0.0, %v387
    %389 = vmatmul.f32.gmra.mxu0 %v336
    %v390 = vpop.f32.mrf.mxu0
    %v391 = vadd.f32 0.0, %v390
    %392 = vdwg.mxu0
    %393 = vmatpush.msra.mxu0 0.0
    %394 = vmatpush.msra.mxu0 0.0
    %395 = vmatpush.msra.mxu0 0.0
    %396 = vmatpush.msra.mxu0 0.0
    %397 = vmatpush.msra.mxu0 0.0
    %398 = vmatpush.msra.mxu0 0.0
    %399 = vmatpush.msra.mxu0 0.0
    %400 = vmatpush.msra.mxu0 0.0
    %401 = vmatpush.msra.mxu0 0.0
    %402 = vmatpush.msra.mxu0 0.0
    %403 = vmatpush.msra.mxu0 0.0
    %404 = vmatpush.msra.mxu0 0.0
    %405 = vmatpush.msra.mxu0 0.0
    %406 = vmatpush.msra.mxu0 %v345
    %407 = vmatpush.msra.mxu0 %v327
    %408 = vmatpush.msra.mxu0 %v324
    %409 = vmatmul.f32.gmra.mxu0 %v333
    %v410 = vpop.f32.mrf.mxu0
    %v411 = vadd.f32 0.0, %v410
    %412 = vmatmul.f32.gmra.mxu0 %v336
    %v413 = vpop.f32.mrf.mxu0
    %v414 = vadd.f32 0.0, %v413
    %415 = vdwg.mxu0
    %vm416 = vcmask 56320
    %v418 = vsel %vm416, %v411, 0
    %v421 = vsel %vm416, %v414, 0
    %vm423 = vcmask 1046528
    %v425 = vsel %vm423, %v234, 0
    %v428 = vsel %vm423, %v235, 0
    %430 = vmatpush.msra.mxu0 %v200
    %431 = vmatpush.msra.mxu0 %v198
    %432 = vmatpush.msra.mxu0 %v196
    %433 = vmatpush.msra.mxu0 %v194
    %434 = vmatpush.msra.mxu0 %v192
    %435 = vmatpush.msra.mxu0 %v190
    %436 = vmatpush.msra.mxu0 %v188
    %437 = vmatpush.msra.mxu0 %v186
    %438 = vmatpush.msra.mxu0 %v184
    %439 = vmatpush.msra.mxu0 %v182
    %440 = vmatpush.msra.mxu0 %v180
    %441 = vmatpush.msra.mxu0 %v178
    %442 = vmatpush.msra.mxu0 %v176
    %443 = vmatpush.msra.mxu0 %v174
    %444 = vmatpush.msra.mxu0 %v172
    %445 = vmatpush.msra.mxu0 %v170
    %446 = vmatmul.f32.gmra.mxu0 %v365
    %v447 = vpop.f32.mrf.mxu0
    %v448 = vadd.f32 0.0, %v447
    %449 = vmatmul.f32.gmra.mxu0 %v368
    %v450 = vpop.f32.mrf.mxu0
    %v451 = vadd.f32 0.0, %v450
    %452 = vdwg.mxu0
    %453 = vmatpush.msra.mxu0 %v232
    %454 = vmatpush.msra.mxu0 %v230
    %455 = vmatpush.msra.mxu0 %v228
    %456 = vmatpush.msra.mxu0 %v226
    %457 = vmatpush.msra.mxu0 %v224
    %458 = vmatpush.msra.mxu0 %v222
    %459 = vmatpush.msra.mxu0 %v220
    %460 = vmatpush.msra.mxu0 %v218
    %461 = vmatpush.msra.mxu0 %v216
    %462 = vmatpush.msra.mxu0 %v214
    %463 = vmatpush.msra.mxu0 %v212
    %464 = vmatpush.msra.mxu0 %v210
    %465 = vmatpush.msra.mxu0 %v208
    %466 = vmatpush.msra.mxu0 %v206
    %467 = vmatpush.msra.mxu0 %v204
    %468 = vmatpush.msra.mxu0 %v202
    %469 = vmatmul.f32.gmra.mxu0 %v388
    %v470 = vpop.f32.mrf.mxu0
    %v471 = vadd.f32 %v448, %v470
    %472 = vmatmul.f32.gmra.mxu0 %v391
    %v473 = vpop.f32.mrf.mxu0
    %v474 = vadd.f32 %v451, %v473
    %475 = vdwg.mxu0
    %476 = vmatpush.msra.mxu0 0.0
    %477 = vmatpush.msra.mxu0 0.0
    %478 = vmatpush.msra.mxu0 0.0
    %479 = vmatpush.msra.mxu0 0.0
    %480 = vmatpush.msra.mxu0 0.0
    %481 = vmatpush.msra.mxu0 0.0
    %482 = vmatpush.msra.mxu0 0.0
    %483 = vmatpush.msra.mxu0 0.0
    %484 = vmatpush.msra.mxu0 0.0
    %485 = vmatpush.msra.mxu0 0.0
    %486 = vmatpush.msra.mxu0 0.0
    %487 = vmatpush.msra.mxu0 0.0
    %488 = vmatpush.msra.mxu0 0.0
    %489 = vmatpush.msra.mxu0 0.0
    %490 = vmatpush.msra.mxu0 0.0
    %491 = vmatpush.msra.mxu0 %v425
    %492 = vmatmul.f32.gmra.mxu0 %v418
    %v493 = vpop.f32.mrf.mxu0
    %v494 = vadd.f32 %v471, %v493
    %495 = vmatmul.f32.gmra.mxu0 %v421
    %v496 = vpop.f32.mrf.mxu0
    %v497 = vadd.f32 %v474, %v496
    %498 = vdwg.mxu0
    %499 = vmatpush.msra.mxu0 %v201
    %500 = vmatpush.msra.mxu0 %v199
    %501 = vmatpush.msra.mxu0 %v197
    %502 = vmatpush.msra.mxu0 %v195
    %503 = vmatpush.msra.mxu0 %v193
    %504 = vmatpush.msra.mxu0 %v191
    %505 = vmatpush.msra.mxu0 %v189
    %506 = vmatpush.msra.mxu0 %v187
    %507 = vmatpush.msra.mxu0 %v185
    %508 = vmatpush.msra.mxu0 %v183
    %509 = vmatpush.msra.mxu0 %v181
    %510 = vmatpush.msra.mxu0 %v179
    %511 = vmatpush.msra.mxu0 %v177
    %512 = vmatpush.msra.mxu0 %v175
    %513 = vmatpush.msra.mxu0 %v173
    %514 = vmatpush.msra.mxu0 %v171
    %515 = vmatmul.f32.gmra.mxu0 %v365
    %v516 = vpop.f32.mrf.mxu0
    %v517 = vadd.f32 0.0, %v516
    %518 = vmatmul.f32.gmra.mxu0 %v368
    %v519 = vpop.f32.mrf.mxu0
    %v520 = vadd.f32 0.0, %v519
    %521 = vdwg.mxu0
    %522 = vmatpush.msra.mxu0 %v233
    %523 = vmatpush.msra.mxu0 %v231
    %524 = vmatpush.msra.mxu0 %v229
    %525 = vmatpush.msra.mxu0 %v227
    %526 = vmatpush.msra.mxu0 %v225
    %527 = vmatpush.msra.mxu0 %v223
    %528 = vmatpush.msra.mxu0 %v221
    %529 = vmatpush.msra.mxu0 %v219
    %530 = vmatpush.msra.mxu0 %v217
    %531 = vmatpush.msra.mxu0 %v215
    %532 = vmatpush.msra.mxu0 %v213
    %533 = vmatpush.msra.mxu0 %v211
    %534 = vmatpush.msra.mxu0 %v209
    %535 = vmatpush.msra.mxu0 %v207
    %536 = vmatpush.msra.mxu0 %v205
    %537 = vmatpush.msra.mxu0 %v203
    %538 = vmatmul.f32.gmra.mxu0 %v388
    %v539 = vpop.f32.mrf.mxu0
    %v540 = vadd.f32 %v517, %v539
    %541 = vmatmul.f32.gmra.mxu0 %v391
    %v542 = vpop.f32.mrf.mxu0
    %v543 = vadd.f32 %v520, %v542
    %544 = vdwg.mxu0
    %545 = vmatpush.msra.mxu0 0.0
    %546 = vmatpush.msra.mxu0 0.0
    %547 = vmatpush.msra.mxu0 0.0
    %548 = vmatpush.msra.mxu0 0.0
    %549 = vmatpush.msra.mxu0 0.0
    %550 = vmatpush.msra.mxu0 0.0
    %551 = vmatpush.msra.mxu0 0.0
    %552 = vmatpush.msra.mxu0 0.0
    %553 = vmatpush.msra.mxu0 0.0
    %554 = vmatpush.msra.mxu0 0.0
    %555 = vmatpush.msra.mxu0 0.0
    %556 = vmatpush.msra.mxu0 0.0
    %557 = vmatpush.msra.mxu0 0.0
    %558 = vmatpush.msra.mxu0 0.0
    %559 = vmatpush.msra.mxu0 0.0
    %560 = vmatpush.msra.mxu0 %v428
    %561 = vmatmul.f32.gmra.mxu0 %v418
    %v562 = vpop.f32.mrf.mxu0
    %v563 = vadd.f32 %v540, %v562
    %564 = vmatmul.f32.gmra.mxu0 %v421
    %v565 = vpop.f32.mrf.mxu0
    %v566 = vadd.f32 %v543, %v565
    %567 = vdwg.mxu0
    %v568 = vmax.f32 %v494, 0.0
    %v569 = vmax.f32 %v563, 0.0
    %v570 = vmax.f32 %v497, 0.0
    %v571 = vmax.f32 %v566, 0.0
    %v572 = vld [vmem:[%s5] sm:$0xff]
    %v573 = vld [vmem:[%s5 + $0x8] sm:$0xff]
    %v574 = vld [vmem:[%s5 + $0x10] sm:$0xff]
    %v575 = vld [vmem:[%s5 + $0x18] sm:$0xff]
    %v576 = vld [vmem:[%s5 + $0x20] sm:$0xff]
    %v577 = vld [vmem:[%s5 + $0x28] sm:$0xff]
    %v578 = vld [vmem:[%s5 + $0x30] sm:$0xff]
    %v579 = vld [vmem:[%s5 + $0x38] sm:$0xff]
    %v580 = vld [vmem:[%s5 + $0x40] sm:$0xff]
    %v581 = vld [vmem:[%s5 + $0x48] sm:$0xff]
    %v582 = vld [vmem:[%s5 + $0x50] sm:$0xff]
    %v583 = vld [vmem:[%s5 + $0x58] sm:$0xff]
    %v584 = vld [vmem:[%s5 + $0x60] sm:$0xff]
    %v585 = vld [vmem:[%s5 + $0x68] sm:$0xff]
    %v586 = vld [vmem:[%s5 + $0x70] sm:$0xff]
    %v587 = vld [vmem:[%s5 + $0x78] sm:$0xff]
    %v588 = vld [vmem:[%s5 + $0x80] sm:$0xff]
    %v589 = vld [vmem:[%s5 + $0x88] sm:$0xff]
    %v590 = vld [vmem:[%s5 + $0x90] sm:$0xff]
    %v591 = vld [vmem:[%s5 + $0x98] sm:$0xff]
    %v592 = vld [vmem:[%s5 + $0xa0] sm:$0xff]
    %v593 = vld [vmem:[%s5 + $0xa8] sm:$0xff]
    %v594 = vld [vmem:[%s5 + $0xb0] sm:$0xff]
    %v595 = vld [vmem:[%s5 + $0xb8] sm:$0xff]
    %v596 = vld [vmem:[%s5 + $0xc0] sm:$0xff]
    %v597 = vld [vmem:[%s5 + $0xc8] sm:$0xff]
    %v598 = vld [vmem:[%s5 + $0xd0] sm:$0xff]
    %v599 = vld [vmem:[%s5 + $0xd8] sm:$0xff]
    %v600 = vld [vmem:[%s5 + $0xe0] sm:$0xff]
    %v601 = vld [vmem:[%s5 + $0xe8] sm:$0xff]
    %v602 = vld [vmem:[%s5 + $0xf0] sm:$0xff]
    %v603 = vld [vmem:[%s5 + $0xf8] sm:$0xff]
    %v604 = vld [vmem:[%s5 + $0x100] sm:$0xff]
    %v605 = vld [vmem:[%s5 + $0x108] sm:$0xff]
    %v606 = vld [vmem:[%s5 + $0x110] sm:$0xff]
    %v607 = vld [vmem:[%s5 + $0x118] sm:$0xff]
    %v608 = vld [vmem:[%s5 + $0x120] sm:$0xff]
    %v609 = vld [vmem:[%s5 + $0x128] sm:$0xff]
    %v610 = vld [vmem:[%s5 + $0x130] sm:$0xff]
    %v611 = vld [vmem:[%s5 + $0x138] sm:$0xff]
    %v612 = vld [vmem:[%s5 + $0x140] sm:$0xff]
    %v613 = vld [vmem:[%s5 + $0x148] sm:$0xff]
    %v614 = vld [vmem:[%s5 + $0x150] sm:$0xff]
    %v615 = vld [vmem:[%s5 + $0x158] sm:$0xff]
    %v616 = vld [vmem:[%s5 + $0x160] sm:$0xff]
    %v617 = vld [vmem:[%s5 + $0x168] sm:$0xff]
    %v618 = vld [vmem:[%s5 + $0x170] sm:$0xff]
    %v619 = vld [vmem:[%s5 + $0x178] sm:$0xff]
    %v620 = vld [vmem:[%s5 + $0x180] sm:$0xf]
    %v621 = vld [vmem:[%s5 + $0x188] sm:$0xf]
    %v622 = vld [vmem:[%s5 + $0x190] sm:$0xf]
    %v623 = vld [vmem:[%s6] sm:$0x7]
    %v625 = vperm.slane %v623, 0
    %v626 = vperm.slane %v623, 1
    %v627 = vperm.slane %v623, 2
    %vm631 = vcmask 31744
    %v633 = vsel %vm631, %v569, 0
    %v636 = vsel %vm631, %v571, 0
    %vm638 = vcmask 1043456
    %v640 = vsel %vm638, %v620, 0
    %v643 = vsel %vm638, %v621, 0
    %v646 = vsel %vm638, %v622, 0
    %648 = vmatpush.msra.mxu0 %v617
    %649 = vmatpush.msra.mxu0 %v614
    %650 = vmatpush.msra.mxu0 %v611
    %651 = vmatpush.msra.mxu0 %v608
    %652 = vmatpush.msra.mxu0 %v605
    %653 = vmatpush.msra.mxu0 %v602
    %654 = vmatpush.msra.mxu0 %v599
    %655 = vmatpush.msra.mxu0 %v596
    %656 = vmatpush.msra.mxu0 %v593
    %657 = vmatpush.msra.mxu0 %v590
    %658 = vmatpush.msra.mxu0 %v587
    %659 = vmatpush.msra.mxu0 %v584
    %660 = vmatpush.msra.mxu0 %v581
    %661 = vmatpush.msra.mxu0 %v578
    %662 = vmatpush.msra.mxu0 %v575
    %663 = vmatpush.msra.mxu0 %v572
    %664 = vmatmul.f32.gmra.mxu0 %v568
    %v665 = vpop.f32.mrf.mxu0
    %v666 = vadd.f32 %v625, %v665
    %667 = vmatmul.f32.gmra.mxu0 %v570
    %v668 = vpop.f32.mrf.mxu0
    %v669 = vadd.f32 %v625, %v668
    %670 = vdwg.mxu0
    %671 = vmatpush.msra.mxu0 0.0
    %672 = vmatpush.msra.mxu0 0.0
    %673 = vmatpush.msra.mxu0 0.0
    %674 = vmatpush.msra.mxu0 0.0
    %675 = vmatpush.msra.mxu0 0.0
    %676 = vmatpush.msra.mxu0 0.0
    %677 = vmatpush.msra.mxu0 0.0
    %678 = vmatpush.msra.mxu0 0.0
    %679 = vmatpush.msra.mxu0 0.0
    %680 = vmatpush.msra.mxu0 0.0
    %681 = vmatpush.msra.mxu0 0.0
    %682 = vmatpush.msra.mxu0 0.0
    %683 = vmatpush.msra.mxu0 0.0
    %684 = vmatpush.msra.mxu0 0.0
    %685 = vmatpush.msra.mxu0 0.0
    %686 = vmatpush.msra.mxu0 %v640
    %687 = vmatmul.f32.gmra.mxu0 %v633
    %v688 = vpop.f32.mrf.mxu0
    %v689 = vadd.f32 %v666, %v688
    %690 = vmatmul.f32.gmra.mxu0 %v636
    %v691 = vpop.f32.mrf.mxu0
    %v692 = vadd.f32 %v669, %v691
    %693 = vdwg.mxu0
    %694 = vmatpush.msra.mxu0 %v618
    %695 = vmatpush.msra.mxu0 %v615
    %696 = vmatpush.msra.mxu0 %v612
    %697 = vmatpush.msra.mxu0 %v609
    %698 = vmatpush.msra.mxu0 %v606
    %699 = vmatpush.msra.mxu0 %v603
    %700 = vmatpush.msra.mxu0 %v600
    %701 = vmatpush.msra.mxu0 %v597
    %702 = vmatpush.msra.mxu0 %v594
    %703 = vmatpush.msra.mxu0 %v591
    %704 = vmatpush.msra.mxu0 %v588
    %705 = vmatpush.msra.mxu0 %v585
    %706 = vmatpush.msra.mxu0 %v582
    %707 = vmatpush.msra.mxu0 %v579
    %708 = vmatpush.msra.mxu0 %v576
    %709 = vmatpush.msra.mxu0 %v573
    %710 = vmatmul.f32.gmra.mxu0 %v568
    %v711 = vpop.f32.mrf.mxu0
    %v712 = vadd.f32 %v626, %v711
    %713 = vmatmul.f32.gmra.mxu0 %v570
    %v714 = vpop.f32.mrf.mxu0
    %v715 = vadd.f32 %v626, %v714
    %716 = vdwg.mxu0
    %717 = vmatpush.msra.mxu0 0.0
    %718 = vmatpush.msra.mxu0 0.0
    %719 = vmatpush.msra.mxu0 0.0
    %720 = vmatpush.msra.mxu0 0.0
    %721 = vmatpush.msra.mxu0 0.0
    %722 = vmatpush.msra.mxu0 0.0
    %723 = vmatpush.msra.mxu0 0.0
    %724 = vmatpush.msra.mxu0 0.0
    %725 = vmatpush.msra.mxu0 0.0
    %726 = vmatpush.msra.mxu0 0.0
    %727 = vmatpush.msra.mxu0 0.0
    %728 = vmatpush.msra.mxu0 0.0
    %729 = vmatpush.msra.mxu0 0.0
    %730 = vmatpush.msra.mxu0 0.0
    %731 = vmatpush.msra.mxu0 0.0
    %732 = vmatpush.msra.mxu0 %v643
    %733 = vmatmul.f32.gmra.mxu0 %v633
    %v734 = vpop.f32.mrf.mxu0
    %v735 = vadd.f32 %v712, %v734
    %736 = vmatmul.f32.gmra.mxu0 %v636
    %v737 = vpop.f32.mrf.mxu0
    %v738 = vadd.f32 %v715, %v737
    %739 = vdwg.mxu0
    %740 = vmatpush.msra.mxu0 %v619
    %741 = vmatpush.msra.mxu0 %v616
    %742 = vmatpush.msra.mxu0 %v613
    %743 = vmatpush.msra.mxu0 %v610
    %744 = vmatpush.msra.mxu0 %v607
    %745 = vmatpush.msra.mxu0 %v604
    %746 = vmatpush.msra.mxu0 %v601
    %747 = vmatpush.msra.mxu0 %v598
    %748 = vmatpush.msra.mxu0 %v595
    %749 = vmatpush.msra.mxu0 %v592
    %750 = vmatpush.msra.mxu0 %v589
    %751 = vmatpush.msra.mxu0 %v586
    %752 = vmatpush.msra.mxu0 %v583
    %753 = vmatpush.msra.mxu0 %v580
    %754 = vmatpush.msra.mxu0 %v577
    %755 = vmatpush.msra.mxu0 %v574
    %756 = vmatmul.f32.gmra.mxu0 %v568
    %v757 = vpop.f32.mrf.mxu0
    %v758 = vadd.f32 %v627, %v757
    %759 = vmatmul.f32.gmra.mxu0 %v570
    %v760 = vpop.f32.mrf.mxu0
    %v761 = vadd.f32 %v627, %v760
    %762 = vdwg.mxu0
    %763 = vmatpush.msra.mxu0 0.0
    %764 = vmatpush.msra.mxu0 0.0
    %765 = vmatpush.msra.mxu0 0.0
    %766 = vmatpush.msra.mxu0 0.0
    %767 = vmatpush.msra.mxu0 0.0
    %768 = vmatpush.msra.mxu0 0.0
    %769 = vmatpush.msra.mxu0 0.0
    %770 = vmatpush.msra.mxu0 0.0
    %771 = vmatpush.msra.mxu0 0.0
    %772 = vmatpush.msra.mxu0 0.0
    %773 = vmatpush.msra.mxu0 0.0
    %774 = vmatpush.msra.mxu0 0.0
    %775 = vmatpush.msra.mxu0 0.0
    %776 = vmatpush.msra.mxu0 0.0
    %777 = vmatpush.msra.mxu0 0.0
    %778 = vmatpush.msra.mxu0 %v646
    %779 = vmatmul.f32.gmra.mxu0 %v633
    %v780 = vpop.f32.mrf.mxu0
    %v781 = vadd.f32 %v758, %v780
    %782 = vmatmul.f32.gmra.mxu0 %v636
    %v783 = vpop.f32.mrf.mxu0
    %v784 = vadd.f32 %v761, %v783
    %785 = vdwg.mxu0
    %v786 = vld [vmem:[%s7] sm:$0x3f]
    %v787 = vld [vmem:[%s8] sm:$0xff]
    %v788 = vld [vmem:[%s8 + $0x8] sm:$0xff]
    %v789 = vld [vmem:[%s8 + $0x10] sm:$0xff]
    %v790 = vld [vmem:[%s8 + $0x18] sm:$0xff]
    %v791 = vld [vmem:[%s8 + $0x20] sm:$0xff]
    %v792 = vld [vmem:[%s8 + $0x28] sm:$0xff]
    %v793 = vld [vmem:[%s8 + $0x30] sm:$0xff]
    %v794 = vld [vmem:[%s8 + $0x38] sm:$0xff]
    %v795 = vld [vmem:[%s8 + $0x40] sm:$0xff]
    %v796 = vld [vmem:[%s8 + $0x48] sm:$0xff]
    %v797 = vld [vmem:[%s8 + $0x50] sm:$0xff]
    %v798 = vld [vmem:[%s8 + $0x58] sm:$0xff]
    %v799 = vld [vmem:[%s8 + $0x60] sm:$0xff]
    %v800 = vld [vmem:[%s8 + $0x68] sm:$0xff]
    %v801 = vld [vmem:[%s8 + $0x70] sm:$0xff]
    %v802 = vld [vmem:[%s8 + $0x78] sm:$0xff]
    %v803 = vld [vmem:[%s8 + $0x80] sm:$0xff]
    %v804 = vld [vmem:[%s8 + $0x88] sm:$0xff]
    %v805 = vld [vmem:[%s8 + $0x90] sm:$0xff]
    %v806 = vld [vmem:[%s8 + $0x98] sm:$0xff]
    %v807 = vld [vmem:[%s8 + $0xa0] sm:$0xff]
    %v808 = vld [vmem:[%s8 + $0xa8] sm:$0xff]
    %v809 = vld [vmem:[%s8 + $0xb0] sm:$0xff]
    %v810 = vld [vmem:[%s8 + $0xb8] sm:$0xff]
    %v811 = vld [vmem:[%s8 + $0xc0] sm:$0xff]
    %v812 = vld [vmem:[%s8 + $0xc8] sm:$0xff]
    %v813 = vld [vmem:[%s8 + $0xd0] sm:$0xff]
    %v814 = vld [vmem:[%s8 + $0xd8] sm:$0xff]
    %v815 = vld [vmem:[%s8 + $0xe0] sm:$0xff]
    %v816 = vld [vmem:[%s8 + $0xe8] sm:$0xff]
    %v817 = vld [vmem:[%s8 + $0xf0] sm:$0xff]
    %v818 = vld [vmem:[%s8 + $0xf8] sm:$0xff]
    %v819 = vld [vmem:[%s8 + $0x100] sm:$0xff]
    %v820 = vld [vmem:[%s8 + $0x108] sm:$0xff]
    %v821 = vld [vmem:[%s8 + $0x110] sm:$0xff]
    %v822 = vld [vmem:[%s8 + $0x118] sm:$0xff]
    %v823 = vld [vmem:[%s8 + $0x120] sm:$0xff]
    %v824 = vld [vmem:[%s8 + $0x128] sm:$0xff]
    %v825 = vld [vmem:[%s8 + $0x130] sm:$0xff]
    %v826 = vld [vmem:[%s8 + $0x138] sm:$0xff]
    %v827 = vld [vmem:[%s8 + $0x140] sm:$0xff]
    %v828 = vld [vmem:[%s8 + $0x148] sm:$0xff]
    %v829 = vld [vmem:[%s8 + $0x150] sm:$0xff]
    %v830 = vld [vmem:[%s8 + $0x158] sm:$0xff]
    %v831 = vld [vmem:[%s8 + $0x160] sm:$0xff]
    %v832 = vld [vmem:[%s8 + $0x168] sm:$0xff]
    %v833 = vld [vmem:[%s8 + $0x170] sm:$0xff]
    %v834 = vld [vmem:[%s8 + $0x178] sm:$0xff]
    %v835 = vld [vmem:[%s8 + $0x180] sm:$0xff]
    %v836 = vld [vmem:[%s8 + $0x188] sm:$0xff]
    %v837 = vld [vmem:[%s8 + $0x190] sm:$0xff]
    %v838 = vld [vmem:[%s8 + $0x198] sm:$0xff]
    %v839 = vld [vmem:[%s8 + $0x1a0] sm:$0xff]
    %v840 = vld [vmem:[%s8 + $0x1a8] sm:$0xff]
    %v841 = vld [vmem:[%s8 + $0x1b0] sm:$0xff]
    %v842 = vld [vmem:[%s8 + $0x1b8] sm:$0xff]
    %v843 = vld [vmem:[%s8 + $0x1c0] sm:$0xff]
    %v844 = vld [vmem:[%s8 + $0x1c8] sm:$0xff]
    %v845 = vld [vmem:[%s8 + $0x1d0] sm:$0xff]
    %v846 = vld [vmem:[%s8 + $0x1d8] sm:$0xff]
    %v847 = vld [vmem:[%s8 + $0x1e0] sm:$0xff]
    %v848 = vld [vmem:[%s8 + $0x1e8] sm:$0xff]
    %v849 = vld [vmem:[%s8 + $0x1f0] sm:$0xff]
    %v850 = vld [vmem:[%s8 + $0x1f8] sm:$0xff]
    %v851 = vld [vmem:[%s8 + $0x200] sm:$0xff]
    %v852 = vld [vmem:[%s8 + $0x208] sm:$0xff]
    %v853 = vld [vmem:[%s8 + $0x210] sm:$0xff]
    %v854 = vld [vmem:[%s8 + $0x218] sm:$0xff]
    %v855 = vld [vmem:[%s8 + $0x220] sm:$0xff]
    %v856 = vld [vmem:[%s8 + $0x228] sm:$0xff]
    %v857 = vld [vmem:[%s8 + $0x230] sm:$0x7f]
    %v858 = vld [vmem:[%s8 + $0x238] sm:$0x7f]
    %v865 = vrot.slane %v689, 2
    %v866 = vrot.slane %v692, 2
    %v867 = vsel %vm245, %v865, %v866
    %v868 = vrot.slane %v735, 2
    %v869 = vrot.slane %v738, 2
    %v870 = vsel %vm245, %v868, %v869
    %v871 = vrot.slane %v781, 2
    %v872 = vrot.slane %v784, 2
    %v873 = vsel %vm245, %v871, %v872
    %v880 = vmax.f32 %v689, %v867
    %v881 = vmax.f32 %v735, %v870
    %v882 = vmax.f32 %v781, %v873
    %v883 = vmax.f32 %v692, %v866
    %v884 = vmax.f32 %v738, %v869
    %v885 = vmax.f32 %v784, %v872
    %892 = vrot.lane.b32.xlu0 %v880, 127
    %v893 = vpop.permute.xlu0 %892
    %894 = vrot.lane.b32.xlu0 %v881, 127
    %v895 = vpop.permute.xlu0 %894
    %896 = vrot.lane.b32.xlu0 %v882, 127
    %v897 = vpop.permute.xlu0 %896
    %898 = vrot.lane.b32.xlu0 %v883, 127
    %v899 = vpop.permute.xlu0 %898
    %900 = vrot.lane.b32.xlu0 %v884, 127
    %v901 = vpop.permute.xlu0 %900
    %902 = vrot.lane.b32.xlu0 %v885, 127
    %v903 = vpop.permute.xlu0 %902
    %v904 = vsel %vm306, %v893, %v895
    %v905 = vsel %vm306, %v895, %v897
    %v906 = vsel %vm306, %v899, %v901
    %v907 = vsel %vm306, %v901, %v903
    %v914 = vmax.f32 %v880, %v904
    %v915 = vmax.f32 %v881, %v905
    %v916 = vmax.f32 %v882, %v897
    %v917 = vmax.f32 %v883, %v906
    %v918 = vmax.f32 %v884, %v907
    %v919 = vmax.f32 %v885, %v903
    %vm920 = vcmask 80896
    %v922 = vsel %vm920, %v786, 0
    %vm924 = vcmask 1041408
    %v926 = vsel %vm924, %v917, 0
    %v929 = vsel %vm924, %v918, 0
    %v932 = vsel %vm924, %v919, 0
    %934 = vmatpush.msra.mxu0 0.0
    %935 = vmatpush.msra.mxu0 0.0
    %936 = vmatpush.msra.mxu0 0.0
    %937 = vmatpush.msra.mxu0 0.0
    %938 = vmatpush.msra.mxu0 0.0
    %939 = vmatpush.msra.mxu0 0.0
    %940 = vmatpush.msra.mxu0 0.0
    %941 = vmatpush.msra.mxu0 0.0
    %942 = vmatpush.msra.mxu0 0.0
    %943 = vmatpush.msra.mxu0 0.0
    %944 = vmatpush.msra.mxu0 0.0
    %945 = vmatpush.msra.mxu0 0.0
    %946 = vmatpush.msra.mxu0 0.0
    %947 = vmatpush.msra.mxu0 0.0
    %948 = vmatpush.msra.mxu0 %v926
    %949 = vmatpush.msra.mxu0 %v914
    %950 = vmatmul.f32.gmra.mxu0 %v922
    %v951 = vpop.f32.mrf.mxu0
    %v952 = vadd.f32 0.0, %v951
    %953 = vdwg.mxu0
    %954 = vmatpush.msra.mxu0 0.0
    %955 = vmatpush.msra.mxu0 0.0
    %956 = vmatpush.msra.mxu0 0.0
    %957 = vmatpush.msra.mxu0 0.0
    %958 = vmatpush.msra.mxu0 0.0
    %959 = vmatpush.msra.mxu0 0.0
    %960 = vmatpush.msra.mxu0 0.0
    %961 = vmatpush.msra.mxu0 0.0
    %962 = vmatpush.msra.mxu0 0.0
    %963 = vmatpush.msra.mxu0 0.0
    %964 = vmatpush.msra.mxu0 0.0
    %965 = vmatpush.msra.mxu0 0.0
    %966 = vmatpush.msra.mxu0 0.0
    %967 = vmatpush.msra.mxu0 0.0
    %968 = vmatpush.msra.mxu0 %v929
    %969 = vmatpush.msra.mxu0 %v915
    %970 = vmatmul.f32.gmra.mxu0 %v922
    %v971 = vpop.f32.mrf.mxu0
    %v972 = vadd.f32 0.0, %v971
    %973 = vdwg.mxu0
    %974 = vmatpush.msra.mxu0 0.0
    %975 = vmatpush.msra.mxu0 0.0
    %976 = vmatpush.msra.mxu0 0.0
    %977 = vmatpush.msra.mxu0 0.0
    %978 = vmatpush.msra.mxu0 0.0
    %979 = vmatpush.msra.mxu0 0.0
    %980 = vmatpush.msra.mxu0 0.0
    %981 = vmatpush.msra.mxu0 0.0
    %982 = vmatpush.msra.mxu0 0.0
    %983 = vmatpush.msra.mxu0 0.0
    %984 = vmatpush.msra.mxu0 0.0
    %985 = vmatpush.msra.mxu0 0.0
    %986 = vmatpush.msra.mxu0 0.0
    %987 = vmatpush.msra.mxu0 0.0
    %988 = vmatpush.msra.mxu0 %v932
    %989 = vmatpush.msra.mxu0 %v916
    %990 = vmatmul.f32.gmra.mxu0 %v922
    %v991 = vpop.f32.mrf.mxu0
    %v992 = vadd.f32 0.0, %v991
    %993 = vdwg.mxu0
    %vm994 = vcmask 252928
    %v996 = vsel %vm994, %v992, 0
    %v999 = vsel %vm423, %v857, 0
    %v1002 = vsel %vm423, %v858, 0
    %1004 = vmatpush.msra.mxu0 %v817
    %1005 = vmatpush.msra.mxu0 %v815
    %1006 = vmatpush.msra.mxu0 %v813
    %1007 = vmatpush.msra.mxu0 %v811
    %1008 = vmatpush.msra.mxu0 %v809
    %1009 = vmatpush.msra.mxu0 %v807
    %1010 = vmatpush.msra.mxu0 %v805
    %1011 = vmatpush.msra.mxu0 %v803
    %1012 = vmatpush.msra.mxu0 %v801
    %1013 = vmatpush.msra.mxu0 %v799
    %1014 = vmatpush.msra.mxu0 %v797
    %1015 = vmatpush.msra.mxu0 %v795
    %1016 = vmatpush.msra.mxu0 %v793
    %1017 = vmatpush.msra.mxu0 %v791
    %1018 = vmatpush.msra.mxu0 %v789
    %1019 = vmatpush.msra.mxu0 %v787
    %1020 = vmatmul.f32.gmra.mxu0 %v952
    %v1021 = vpop.f32.mrf.mxu0
    %v1022 = vadd.f32 0.0, %v1021
    %1023 = vdwg.mxu0
    %1024 = vmatpush.msra.mxu0 %v849
    %1025 = vmatpush.msra.mxu0 %v847
    %1026 = vmatpush.msra.mxu0 %v845
    %1027 = vmatpush.msra.mxu0 %v843
    %1028 = vmatpush.msra.mxu0 %v841
    %1029 = vmatpush.msra.mxu0 %v839
    %1030 = vmatpush.msra.mxu0 %v837
    %1031 = vmatpush.msra.mxu0 %v835
    %1032 = vmatpush.msra.mxu0 %v833
    %1033 = vmatpush.msra.mxu0 %v831
    %1034 = vmatpush.msra.mxu0 %v829
    %1035 = vmatpush.msra.mxu0 %v827
    %1036 = vmatpush.msra.mxu0 %v825
    %1037 = vmatpush.msra.mxu0 %v823
    %1038 = vmatpush.msra.mxu0 %v821
    %1039 = vmatpush.msra.mxu0 %v819
    %1040 = vmatmul.f32.gmra.mxu0 %v972
    %v1041 = vpop.f32.mrf.mxu0
    %v1042 = vadd.f32 %v1022, %v1041
    %1043 = vdwg.mxu0
    %1044 = vmatpush.msra.mxu0 0.0
    %1045 = vmatpush.msra.mxu0 0.0
    %1046 = vmatpush.msra.mxu0 0.0
    %1047 = vmatpush.msra.mxu0 0.0
    %1048 = vmatpush.msra.mxu0 0.0
    %1049 = vmatpush.msra.mxu0 0.0
    %1050 = vmatpush.msra.mxu0 0.0
    %1051 = vmatpush.msra.mxu0 0.0
    %1052 = vmatpush.msra.mxu0 0.0
    %1053 = vmatpush.msra.mxu0 0.0
    %1054 = vmatpush.msra.mxu0 0.0
    %1055 = vmatpush.msra.mxu0 0.0
    %1056 = vmatpush.msra.mxu0 %v999
    %1057 = vmatpush.msra.mxu0 %v855
    %1058 = vmatpush.msra.mxu0 %v853
    %1059 = vmatpush.msra.mxu0 %v851
    %1060 = vmatmul.f32.gmra.mxu0 %v996
    %v1061 = vpop.f32.mrf.mxu0
    %v1062 = vadd.f32 %v1042, %v1061
    %1063 = vdwg.mxu0
    %1064 = vmatpush.msra.mxu0 %v818
    %1065 = vmatpush.msra.mxu0 %v816
    %1066 = vmatpush.msra.mxu0 %v814
    %1067 = vmatpush.msra.mxu0 %v812
    %1068 = vmatpush.msra.mxu0 %v810
    %1069 = vmatpush.msra.mxu0 %v808
    %1070 = vmatpush.msra.mxu0 %v806
    %1071 = vmatpush.msra.mxu0 %v804
    %1072 = vmatpush.msra.mxu0 %v802
    %1073 = vmatpush.msra.mxu0 %v800
    %1074 = vmatpush.msra.mxu0 %v798
    %1075 = vmatpush.msra.mxu0 %v796
    %1076 = vmatpush.msra.mxu0 %v794
    %1077 = vmatpush.msra.mxu0 %v792
    %1078 = vmatpush.msra.mxu0 %v790
    %1079 = vmatpush.msra.mxu0 %v788
    %1080 = vmatmul.f32.gmra.mxu0 %v952
    %v1081 = vpop.f32.mrf.mxu0
    %v1082 = vadd.f32 0.0, %v1081
    %1083 = vdwg.mxu0
    %1084 = vmatpush.msra.mxu0 %v850
    %1085 = vmatpush.msra.mxu0 %v848
    %1086 = vmatpush.msra.mxu0 %v846
    %1087 = vmatpush.msra.mxu0 %v844
    %1088 = vmatpush.msra.mxu0 %v842
    %1089 = vmatpush.msra.mxu0 %v840
    %1090 = vmatpush.msra.mxu0 %v838
    %1091 = vmatpush.msra.mxu0 %v836
    %1092 = vmatpush.msra.mxu0 %v834
    %1093 = vmatpush.msra.mxu0 %v832
    %1094 = vmatpush.msra.mxu0 %v830
    %1095 = vmatpush.msra.mxu0 %v828
    %1096 = vmatpush.msra.mxu0 %v826
    %1097 = vmatpush.msra.mxu0 %v824
    %1098 = vmatpush.msra.mxu0 %v822
    %1099 = vmatpush.msra.mxu0 %v820
    %1100 = vmatmul.f32.gmra.mxu0 %v972
    %v1101 = vpop.f32.mrf.mxu0
    %v1102 = vadd.f32 %v1082, %v1101
    %1103 = vdwg.mxu0
    %1104 = vmatpush.msra.mxu0 0.0
    %1105 = vmatpush.msra.mxu0 0.0
    %1106 = vmatpush.msra.mxu0 0.0
    %1107 = vmatpush.msra.mxu0 0.0
    %1108 = vmatpush.msra.mxu0 0.0
    %1109 = vmatpush.msra.mxu0 0.0
    %1110 = vmatpush.msra.mxu0 0.0
    %1111 = vmatpush.msra.mxu0 0.0
    %1112 = vmatpush.msra.mxu0 0.0
    %1113 = vmatpush.msra.mxu0 0.0
    %1114 = vmatpush.msra.mxu0 0.0
    %1115 = vmatpush.msra.mxu0 0.0
    %1116 = vmatpush.msra.mxu0 %v1002
    %1117 = vmatpush.msra.mxu0 %v856
    %1118 = vmatpush.msra.mxu0 %v854
    %1119 = vmatpush.msra.mxu0 %v852
    %1120 = vmatmul.f32.gmra.mxu0 %v996
    %v1121 = vpop.f32.mrf.mxu0
    %v1122 = vadd.f32 %v1102, %v1121
    %1123 = vdwg.mxu0
    %v1124 = vmax.f32 %v1062, 0.0
    %v1125 = vmax.f32 %v1122, 0.0
    %v1126 = vld [vmem:[%s10] sm:$0x1]
    %v1127 = vld [vmem:[%s9] sm:$0xff]
    %v1128 = vld [vmem:[%s9 + $0x8] sm:$0xff]
    %v1129 = vld [vmem:[%s9 + $0x10] sm:$0xff]
    %v1130 = vld [vmem:[%s9 + $0x18] sm:$0xff]
    %v1131 = vld [vmem:[%s9 + $0x20] sm:$0xff]
    %v1132 = vld [vmem:[%s9 + $0x28] sm:$0xff]
    %v1133 = vld [vmem:[%s9 + $0x30] sm:$0xff]
    %v1134 = vld [vmem:[%s9 + $0x38] sm:$0xff]
    %v1135 = vld [vmem:[%s9 + $0x40] sm:$0xff]
    %v1136 = vld [vmem:[%s9 + $0x48] sm:$0xff]
    %v1137 = vld [vmem:[%s9 + $0x50] sm:$0xff]
    %v1138 = vld [vmem:[%s9 + $0x58] sm:$0xff]
    %v1139 = vld [vmem:[%s9 + $0x60] sm:$0xff]
    %v1140 = vld [vmem:[%s9 + $0x68] sm:$0xff]
    %v1141 = vld [vmem:[%s9 + $0x70] sm:$0xff]
    %v1142 = vld [vmem:[%s9 + $0x78] sm:$0xff]
    %v1143 = vld [vmem:[%s9 + $0x80] sm:$0xff]
    %v1144 = vld [vmem:[%s9 + $0x88] sm:$0xff]
    %vm1145 = vcmask 130048
    %v1147 = vsel %vm1145, %v1125, 0
    %1149 = vmatpush.msra.mxu0 %v1142
    %1150 = vmatpush.msra.mxu0 %v1141
    %1151 = vmatpush.msra.mxu0 %v1140
    %1152 = vmatpush.msra.mxu0 %v1139
    %1153 = vmatpush.msra.mxu0 %v1138
    %1154 = vmatpush.msra.mxu0 %v1137
    %1155 = vmatpush.msra.mxu0 %v1136
    %1156 = vmatpush.msra.mxu0 %v1135
    %1157 = vmatpush.msra.mxu0 %v1134
    %1158 = vmatpush.msra.mxu0 %v1133
    %1159 = vmatpush.msra.mxu0 %v1132
    %1160 = vmatpush.msra.mxu0 %v1131
    %1161 = vmatpush.msra.mxu0 %v1130
    %1162 = vmatpush.msra.mxu0 %v1129
    %1163 = vmatpush.msra.mxu0 %v1128
    %1164 = vmatpush.msra.mxu0 %v1127
    %1165 = vmatmul.f32.gmra.mxu0 %v1124
    %v1166 = vpop.f32.mrf.mxu0
    %v1167 = vadd.f32 0.0, %v1166
    %1168 = vdwg.mxu0
    %1169 = vmatpush.msra.mxu0 0.0
    %1170 = vmatpush.msra.mxu0 0.0
    %1171 = vmatpush.msra.mxu0 0.0
    %1172 = vmatpush.msra.mxu0 0.0
    %1173 = vmatpush.msra.mxu0 0.0
    %1174 = vmatpush.msra.mxu0 0.0
    %1175 = vmatpush.msra.mxu0 0.0
    %1176 = vmatpush.msra.mxu0 0.0
    %1177 = vmatpush.msra.mxu0 0.0
    %1178 = vmatpush.msra.mxu0 0.0
    %1179 = vmatpush.msra.mxu0 0.0
    %1180 = vmatpush.msra.mxu0 0.0
    %1181 = vmatpush.msra.mxu0 0.0
    %1182 = vmatpush.msra.mxu0 0.0
    %1183 = vmatpush.msra.mxu0 %v1144
    %1184 = vmatpush.msra.mxu0 %v1143
    %1185 = vmatmul.f32.gmra.mxu0 %v1147
    %v1186 = vpop.f32.mrf.mxu0
    %v1187 = vadd.f32 %v1167, %v1186
    %1188 = vdwg.mxu0
    %v1190 = vperm.slane %v1126, 0
    %v1192 = vadd.f32 %v1190, %v1187
    %s1193 = scalar_lea.vmem %s9, 144
    %v1194 = vld [vmem:[%s1193] sm:$0xff]
    %v1195 = vld [vmem:[%s1193 + $0x8] sm:$0xff]
    %v1196 = vld [vmem:[%s1193 + $0x10] sm:$0xff]
    %v1197 = vld [vmem:[%s1193 + $0x18] sm:$0xff]
    %v1198 = vld [vmem:[%s1193 + $0x20] sm:$0xff]
    %v1199 = vld [vmem:[%s1193 + $0x28] sm:$0xff]
    %v1200 = vld [vmem:[%s1193 + $0x30] sm:$0xff]
    %v1201 = vld [vmem:[%s1193 + $0x38] sm:$0xff]
    %v1202 = vld [vmem:[%s1193 + $0x40] sm:$0xff]
    %v1203 = vld [vmem:[%s1193 + $0x48] sm:$0xff]
    %v1204 = vld [vmem:[%s1193 + $0x50] sm:$0xff]
    %v1205 = vld [vmem:[%s1193 + $0x58] sm:$0xff]
    %v1206 = vld [vmem:[%s1193 + $0x60] sm:$0xff]
    %v1207 = vld [vmem:[%s1193 + $0x68] sm:$0xff]
    %v1208 = vld [vmem:[%s1193 + $0x70] sm:$0xff]
    %v1209 = vld [vmem:[%s1193 + $0x78] sm:$0xff]
    %v1210 = vld [vmem:[%s1193 + $0x80] sm:$0xff]
    %v1211 = vld [vmem:[%s1193 + $0x88] sm:$0xff]
    %v1213 = vrot.slane %v1124, 2
    %v1214 = vrot.slane %v1125, 2
    %v1216 = vsel %vm1145, %v1214, 0
    %1218 = vmatpush.msra.mxu0 %v1209
    %1219 = vmatpush.msra.mxu0 %v1208
    %1220 = vmatpush.msra.mxu0 %v1207
    %1221 = vmatpush.msra.mxu0 %v1206
    %1222 = vmatpush.msra.mxu0 %v1205
    %1223 = vmatpush.msra.mxu0 %v1204
    %1224 = vmatpush.msra.mxu0 %v1203
    %1225 = vmatpush.msra.mxu0 %v1202
    %1226 = vmatpush.msra.mxu0 %v1201
    %1227 = vmatpush.msra.mxu0 %v1200
    %1228 = vmatpush.msra.mxu0 %v1199
    %1229 = vmatpush.msra.mxu0 %v1198
    %1230 = vmatpush.msra.mxu0 %v1197
    %1231 = vmatpush.msra.mxu0 %v1196
    %1232 = vmatpush.msra.mxu0 %v1195
    %1233 = vmatpush.msra.mxu0 %v1194
    %1234 = vmatmul.f32.gmra.mxu0 %v1213
    %v1235 = vpop.f32.mrf.mxu0
    %v1236 = vadd.f32 0.0, %v1235
    %1237 = vdwg.mxu0
    %1238 = vmatpush.msra.mxu0 0.0
    %1239 = vmatpush.msra.mxu0 0.0
    %1240 = vmatpush.msra.mxu0 0.0
    %1241 = vmatpush.msra.mxu0 0.0
    %1242 = vmatpush.msra.mxu0 0.0
    %1243 = vmatpush.msra.mxu0 0.0
    %1244 = vmatpush.msra.mxu0 0.0
    %1245 = vmatpush.msra.mxu0 0.0
    %1246 = vmatpush.msra.mxu0 0.0
    %1247 = vmatpush.msra.mxu0 0.0
    %1248 = vmatpush.msra.mxu0 0.0
    %1249 = vmatpush.msra.mxu0 0.0
    %1250 = vmatpush.msra.mxu0 0.0
    %1251 = vmatpush.msra.mxu0 0.0
    %1252 = vmatpush.msra.mxu0 %v1211
    %1253 = vmatpush.msra.mxu0 %v1210
    %1254 = vmatmul.f32.gmra.mxu0 %v1216
    %v1255 = vpop.f32.mrf.mxu0
    %v1256 = vadd.f32 %v1236, %v1255
    %1257 = vdwg.mxu0
    %v1258 = vadd.f32 %v1192, %v1256
    %s1259 = scalar_lea.vmem %s9, 288
    %v1260 = vld [vmem:[%s1259] sm:$0xff]
    %v1261 = vld [vmem:[%s1259 + $0x8] sm:$0xff]
    %v1262 = vld [vmem:[%s1259 + $0x10] sm:$0xff]
    %v1263 = vld [vmem:[%s1259 + $0x18] sm:$0xff]
    %v1264 = vld [vmem:[%s1259 + $0x20] sm:$0xff]
    %v1265 = vld [vmem:[%s1259 + $0x28] sm:$0xff]
    %v1266 = vld [vmem:[%s1259 + $0x30] sm:$0xff]
    %v1267 = vld [vmem:[%s1259 + $0x38] sm:$0xff]
    %v1268 = vld [vmem:[%s1259 + $0x40] sm:$0xff]
    %v1269 = vld [vmem:[%s1259 + $0x48] sm:$0xff]
    %v1270 = vld [vmem:[%s1259 + $0x50] sm:$0xff]
    %v1271 = vld [vmem:[%s1259 + $0x58] sm:$0xff]
    %v1272 = vld [vmem:[%s1259 + $0x60] sm:$0xff]
    %v1273 = vld [vmem:[%s1259 + $0x68] sm:$0xff]
    %v1274 = vld [vmem:[%s1259 + $0x70] sm:$0xff]
    %v1275 = vld [vmem:[%s1259 + $0x78] sm:$0xff]
    %v1276 = vld [vmem:[%s1259 + $0x80] sm:$0xff]
    %v1277 = vld [vmem:[%s1259 + $0x88] sm:$0xff]
    %v1278 = vrot.slane %v1124, 4
    %v1279 = vrot.slane %v1125, 4
    %v1281 = vsel %vm1145, %v1279, 0
    %1283 = vmatpush.msra.mxu0 %v1275
    %1284 = vmatpush.msra.mxu0 %v1274
    %1285 = vmatpush.msra.mxu0 %v1273
    %1286 = vmatpush.msra.mxu0 %v1272
    %1287 = vmatpush.msra.mxu0 %v1271
    %1288 = vmatpush.msra.mxu0 %v1270
    %1289 = vmatpush.msra.mxu0 %v1269
    %1290 = vmatpush.msra.mxu0 %v1268
    %1291 = vmatpush.msra.mxu0 %v1267
    %1292 = vmatpush.msra.mxu0 %v1266
    %1293 = vmatpush.msra.mxu0 %v1265
    %1294 = vmatpush.msra.mxu0 %v1264
    %1295 = vmatpush.msra.mxu0 %v1263
    %1296 = vmatpush.msra.mxu0 %v1262
    %1297 = vmatpush.msra.mxu0 %v1261
    %1298 = vmatpush.msra.mxu0 %v1260
    %1299 = vmatmul.f32.gmra.mxu0 %v1278
    %v1300 = vpop.f32.mrf.mxu0
    %v1301 = vadd.f32 0.0, %v1300
    %1302 = vdwg.mxu0
    %1303 = vmatpush.msra.mxu0 0.0
    %1304 = vmatpush.msra.mxu0 0.0
    %1305 = vmatpush.msra.mxu0 0.0
    %1306 = vmatpush.msra.mxu0 0.0
    %1307 = vmatpush.msra.mxu0 0.0
    %1308 = vmatpush.msra.mxu0 0.0
    %1309 = vmatpush.msra.mxu0 0.0
    %1310 = vmatpush.msra.mxu0 0.0
    %1311 = vmatpush.msra.mxu0 0.0
    %1312 = vmatpush.msra.mxu0 0.0
    %1313 = vmatpush.msra.mxu0 0.0
    %1314 = vmatpush.msra.mxu0 0.0
    %1315 = vmatpush.msra.mxu0 0.0
    %1316 = vmatpush.msra.mxu0 0.0
    %1317 = vmatpush.msra.mxu0 %v1277
    %1318 = vmatpush.msra.mxu0 %v1276
    %1319 = vmatmul.f32.gmra.mxu0 %v1281
    %v1320 = vpop.f32.mrf.mxu0
    %v1321 = vadd.f32 %v1301, %v1320
    %1322 = vdwg.mxu0
    %v1323 = vadd.f32 %v1258, %v1321
    %v1324 = vmax.f32 %v1323, 0.0
    %v1325 = vld [vmem:[%s11] sm:$0xff]
    %v1326 = vld [vmem:[%s11 + $0x8] sm:$0xff]
    %v1327 = vld [vmem:[%s11 + $0x10] sm:$0xff]
    %v1328 = vld [vmem:[%s11 + $0x18] sm:$0xff]
    %v1329 = vld [vmem:[%s11 + $0x20] sm:$0xff]
    %v1330 = vld [vmem:[%s11 + $0x28] sm:$0xff]
    %v1331 = vld [vmem:[%s11 + $0x30] sm:$0xff]
    %v1332 = vld [vmem:[%s11 + $0x38] sm:$0xff]
    %v1333 = vld [vmem:[%s11 + $0x40] sm:$0xff]
    %v1334 = vld [vmem:[%s11 + $0x48] sm:$0xff]
    %v1335 = vld [vmem:[%s11 + $0x50] sm:$0xff]
    %v1336 = vld [vmem:[%s11 + $0x58] sm:$0xff]
    %v1337 = vld [vmem:[%s11 + $0x60] sm:$0xf]
    %v1338 = vld [vmem:[%s12] sm:$0x1]
    %v1340 = vperm.slane %v1338, 0
    %vm1342 = vcmask 818176
    %v1344 = vsel %vm1342, %v1324, 0
    %v1347 = vsel %vm638, %v1337, 0
    %1349 = vmatpush.msra.mxu0 0.0
    %1350 = vmatpush.msra.mxu0 0.0
    %1351 = vmatpush.msra.mxu0 0.0
    %1352 = vmatpush.msra.mxu0 %v1347
    %1353 = vmatpush.msra.mxu0 %v1336
    %1354 = vmatpush.msra.mxu0 %v1335
    %1355 = vmatpush.msra.mxu0 %v1334
    %1356 = vmatpush.msra.mxu0 %v1333
    %1357 = vmatpush.msra.mxu0 %v1332
    %1358 = vmatpush.msra.mxu0 %v1331
    %1359 = vmatpush.msra.mxu0 %v1330
    %1360 = vmatpush.msra.mxu0 %v1329
    %1361 = vmatpush.msra.mxu0 %v1328
    %1362 = vmatpush.msra.mxu0 %v1327
    %1363 = vmatpush.msra.mxu0 %v1326
    %1364 = vmatpush.msra.mxu0 %v1325
    %1365 = vmatmul.f32.gmra.mxu0 %v1344
    %v1366 = vpop.f32.mrf.mxu0
    %v1367 = vadd.f32 %v1340, %v1366
    %1368 = vdwg.mxu0
    %v1369 = vmax.f32 %v1367, 0.0
    %v1370 = vld [vmem:[%s13] sm:$0xff]
    %v1371 = vld [vmem:[%s13 + $0x8] sm:$0xff]
    %v1372 = vld [vmem:[%s13 + $0x10] sm:$0xff]
    %v1373 = vld [vmem:[%s13 + $0x18] sm:$0xff]
    %v1374 = vld [vmem:[%s13 + $0x20] sm:$0xff]
    %v1375 = vld [vmem:[%s13 + $0x28] sm:$0xff]
    %v1376 = vld [vmem:[%s13 + $0x30] sm:$0x3]
    %v1377 = vld [vmem:[%s14] sm:$0x1]
    %v1379 = vperm.slane %v1377, 0
    %vm1381 = vcmask 408576
    %v1383 = vsel %vm1381, %v1369, 0
    %v1386 = vsel %vm924, %v1376, 0
    %1388 = vmatpush.msra.mxu0 0.0
    %1389 = vmatpush.msra.mxu0 0.0
    %1390 = vmatpush.msra.mxu0 0.0
    %1391 = vmatpush.msra.mxu0 0.0
    %1392 = vmatpush.msra.mxu0 0.0
    %1393 = vmatpush.msra.mxu0 0.0
    %1394 = vmatpush.msra.mxu0 0.0
    %1395 = vmatpush.msra.mxu0 0.0
    %1396 = vmatpush.msra.mxu0 0.0
    %1397 = vmatpush.msra.mxu0 %v1386
    %1398 = vmatpush.msra.mxu0 %v1375
    %1399 = vmatpush.msra.mxu0 %v1374
    %1400 = vmatpush.msra.mxu0 %v1373
    %1401 = vmatpush.msra.mxu0 %v1372
    %1402 = vmatpush.msra.mxu0 %v1371
    %1403 = vmatpush.msra.mxu0 %v1370
    %1404 = vmatmul.f32.gmra.mxu0 %v1383
    %v1405 = vpop.f32.mrf.mxu0
    %v1406 = vadd.f32 %v1379, %v1405
    %1407 = vdwg.mxu0
    %1408 = vst [vmem:[#allocation2] sm:$0x3] %v1406
    // Predicated region
    $region62: #{modified_motion_forward.1} parent=1 // pred_check
      _
    $region63: #{modified_motion_forward.1} parent=1 // pred_check_branch
      %1410 = sbr.rel (0) target = $region65
    $region64: #{modified_motion_forward.1} parent=1 // pred_region
      %1412 = vsyncadd [#allocation3], 0
      %s1414 = sshll.u32 [#allocation2], 4
      %s1415 = int_to_ptr.vmem [resolvable:$true] %s1414
      %s1416 = sshll.u32 %s15, 4
      %s1417 = int_to_ptr.hbm [resolvable:$true] %s1416
      %1419 = dma.vmem_to_hbm [thread:$0]  %s1415, 32, %s1417, [#allocation3]
    $region65: #{modified_motion_forward.1} parent=1 // pred_fallthru
      _
    // Predicated region
    $region66: #{modified_motion_forward.1} parent=1 // pred_check
      _
    $region67: #{modified_motion_forward.1} parent=1 // pred_check_branch
      %1421 = sbr.rel (0) target = $region69
    $region68: #{modified_motion_forward.1} parent=1 // pred_region
      %1423 = dma.done [#allocation3], 32
    $region69: #{modified_motion_forward.1} parent=1 // pred_fallthru
      _
    %1424 = vsyncpa [#allocation3], 1

</llo_original>
